<compile_context>
chip_gen: v7x
topology: tpu7x:2x2x1
jax: 0.10.0
libtpu: 0.0.40
codegen_flags: <defaults>
</compile_context>

<pallas_src>
import functools

import jax
import jax.numpy as jnp
from jax import lax
from jax.experimental import pallas as pl
from jax.experimental.pallas import tpu as pltpu


def _round_up(x, m):
    return ((x + m - 1) // m) * m


def _pick_tile(size, max_tile, align):
    """Pick a tile size (multiple of `align`, <= max_tile) minimizing padding."""
    size_a = _round_up(size, align)
    if size_a <= max_tile:
        return size_a
    best_t = max_tile
    best_pad = _round_up(size, max_tile) - size
    t = max_tile - align
    lo = max(align, max_tile // 2)
    while t >= lo and best_pad > 0:
        pad = _round_up(size, t) - size
        if pad < best_pad:
            best_t, best_pad = t, pad
        t -= align
    return best_t


# ---------------------------------------------------------------------------
# Kernel 1: tiled dense projection  y = x @ W  (+ b optional, separate kernel)
# ---------------------------------------------------------------------------
def _matmul_kernel(x_ref, w_ref, o_ref, acc_ref):
    @pl.when(pl.program_id(2) == 0)
    def _():
        acc_ref[...] = jnp.zeros_like(acc_ref)

    acc_ref[...] += jnp.dot(
        x_ref[...], w_ref[...], preferred_element_type=jnp.float32
    )

    @pl.when(pl.program_id(2) == pl.num_programs(2) - 1)
    def _():
        o_ref[...] = acc_ref[...].astype(o_ref.dtype)


def _matmul_bias_kernel(x_ref, w_ref, b_ref, o_ref, acc_ref):
    @pl.when(pl.program_id(2) == 0)
    def _():
        acc_ref[...] = jnp.zeros_like(acc_ref)

    acc_ref[...] += jnp.dot(
        x_ref[...], w_ref[...], preferred_element_type=jnp.float32
    )

    @pl.when(pl.program_id(2) == pl.num_programs(2) - 1)
    def _():
        o_ref[...] = (acc_ref[...] + b_ref[...]).astype(o_ref.dtype)


def dense(x2d, w, bias=None, *, max_tm=512, max_tn=512, max_tk=512,
          out_dtype=None):
    """Tiled, pipelined y = x2d @ w (+ bias). Pads to tile multiples, slices back."""
    M, K = x2d.shape
    _, Nout = w.shape
    out_dtype = out_dtype if out_dtype is not None else x2d.dtype

    tm = _pick_tile(M, max_tm, 8)
    tk = _pick_tile(K, max_tk, 128)
    tn = _pick_tile(Nout, max_tn, 128)
    Mp, Kp, Np = _round_up(M, tm), _round_up(K, tk), _round_up(Nout, tn)

    xp = x2d if (Mp == M and Kp == K) else jnp.pad(x2d, ((0, Mp - M), (0, Kp - K)))
    wp = w if (Kp == K and Np == Nout) else jnp.pad(w, ((0, Kp - K), (0, Np - Nout)))

    x_spec = pl.BlockSpec((tm, tk), lambda i, j, k: (i, k))
    w_spec = pl.BlockSpec((tk, tn), lambda i, j, k: (k, j))
    out_spec = pl.BlockSpec((tm, tn), lambda i, j, k: (i, j))

    if bias is None:
        kernel = _matmul_kernel
        in_specs = [x_spec, w_spec]
        args = (xp, wp)
    else:
        bp = bias.reshape(1, Nout).astype(jnp.float32)
        if Np != Nout:
            bp = jnp.pad(bp, ((0, 0), (0, Np - Nout)))
        kernel = _matmul_bias_kernel
        in_specs = [x_spec, w_spec, pl.BlockSpec((1, tn), lambda i, j, k: (0, j))]
        args = (xp, wp, bp)

    out = pl.pallas_call(
        kernel,
        out_shape=jax.ShapeDtypeStruct((Mp, Np), out_dtype),
        grid_spec=pltpu.PrefetchScalarGridSpec(
            num_scalar_prefetch=0,
            grid=(Mp // tm, Np // tn, Kp // tk),
            in_specs=in_specs,
            out_specs=out_spec,
            scratch_shapes=[pltpu.VMEM((tm, tn), jnp.float32)],
        ),
        compiler_params=pltpu.CompilerParams(
            dimension_semantics=("parallel", "parallel", "arbitrary")
        ),
    )(*args)

    if Mp != M or Np != Nout:
        out = out[:M, :Nout]
    return out


# ---------------------------------------------------------------------------
# Kernel 2: fused multi-head attention + output projection.
#   grid = (B, H): the head axis is a reduction axis; each step computes one
#   head's attention output and accumulates attn_h @ Wproj[h] into an
#   (n_pad, C) f32 accumulator; bias + store at the last head.
#
#   qkv    : (B, 3, H, n_pad, head_dim)  bf16   (lane-dense per-head blocks)
#   w_proj : (H, head_dim, C)            bf16
#   b_proj : (1, C)                      f32
#   out    : (B, n_pad, C)
# ---------------------------------------------------------------------------
def _make_attn_proj_kernel(num_heads, n_valid, n_pad, scale):
    def kernel(qkv_ref, wp_ref, bp_ref, o_ref, acc_ref):
        h = pl.program_id(1)

        @pl.when(h == 0)
        def _():
            acc_ref[...] = jnp.zeros_like(acc_ref)

        # Lane-dense (n_pad, head_dim) tiles; scale folded into q (N*hd muls).
        q = qkv_ref[0] * scale
        k = qkv_ref[1]
        v = qkv_ref[2]

        # (n_pad, n_pad) scores: contract last dims directly (no XLU transpose).
        s = lax.dot_general(
            q, k, (((1,), (1,)), ((), ())),
            preferred_element_type=jnp.float32,
        )

        if n_pad > n_valid:  # mask padded key columns (static at trace time)
            col = lax.broadcasted_iota(jnp.int32, (n_pad, n_pad), 1)
            s = jnp.where(col < n_valid, s, -1e30)

        m = jnp.max(s, axis=-1, keepdims=True)
        p = jnp.exp(s - m)
        denom = jnp.sum(p, axis=-1, keepdims=True)
        p = p * pl.reciprocal(denom, approx=True)

        # (n_pad, head_dim) head output in f32.
        o_h = lax.dot_general(
            p.astype(v.dtype), v, (((1,), (0,)), ((), ())),
            preferred_element_type=jnp.float32,
        )

        # Immediately project this head's slab of Wproj and accumulate.
        acc_ref[...] += lax.dot_general(
            o_h.astype(wp_ref.dtype), wp_ref[...], (((1,), (0,)), ((), ())),
            preferred_element_type=jnp.float32,
        )

        @pl.when(h == num_heads - 1)
        def _():
            # Single lane-dense (n_pad, C) store.
            o_ref[...] = (acc_ref[...] + bp_ref[...]).astype(o_ref.dtype)

    return kernel


def attention_proj(qkv, w_proj_h, b_proj, *, num_heads, head_dim, dim,
                   n_valid, n_pad, scale, out_dtype):
    B = qkv.shape[0]
    kernel = _make_attn_proj_kernel(num_heads, n_valid, n_pad, scale)
    # TODO(synk): for large N (>~1024; earlier on v7x's 64 MiB VMEM), switch to
    # flash-style online softmax over a kv grid axis instead of full (N, N) scores.
    # TODO(synk): for B == 1 on v7x, add a q-row-tile parallel axis so both
    # TensorCores are occupied.
    return pl.pallas_call(
        kernel,
        out_shape=jax.ShapeDtypeStruct((B, n_pad, dim), out_dtype),
        grid_spec=pltpu.PrefetchScalarGridSpec(
            num_scalar_prefetch=0,
            grid=(B, num_heads),
            in_specs=[
                pl.BlockSpec((None, 3, None, n_pad, head_dim),
                             lambda b, h: (b, 0, h, 0, 0)),
                pl.BlockSpec((None, head_dim, dim), lambda b, h: (h, 0, 0)),
                pl.BlockSpec((1, dim), lambda b, h: (0, 0)),
            ],
            out_specs=pl.BlockSpec((None, n_pad, dim), lambda b, h: (b, 0, 0)),
            scratch_shapes=[pltpu.VMEM((n_pad, dim), jnp.float32)],
        ),
        compiler_params=pltpu.CompilerParams(
            dimension_semantics=("parallel", "arbitrary")
        ),
    )(qkv, w_proj_h, b_proj)


# ---------------------------------------------------------------------------
# Full QAttention forward
# ---------------------------------------------------------------------------
def qattention_forward(x, params, num_heads, compute_dtype=jnp.bfloat16):
    B, N, C = x.shape
    head_dim = C // num_heads
    scale = head_dim ** (-0.5)
    out_dtype = x.dtype

    xc = x.astype(compute_dtype)
    w_qkv = params["w_qkv"].astype(compute_dtype)
    w_proj = params["w_proj"].astype(compute_dtype)

    # qkv linear (no bias: qkv_bias=False default). q_norm/k_norm are Identity.
    qkv = dense(xc.reshape(B * N, C), w_qkv, bias=None, out_dtype=compute_dtype)

    # Relayout to per-head lane-dense blocks: (B, 3, H, N, head_dim).
    # TODO(synk): on v5e, fusing the per-batch qkv matmul into the attention
    # kernel would remove this HBM round trip entirely.
    qkv = qkv.reshape(B, N, 3, num_heads, head_dim).transpose(0, 2, 3, 1, 4)

    # Pad tokens to a lane multiple (128); padded key columns masked in-kernel.
    n_pad = _round_up(N, 128)
    if n_pad != N:
        qkv = jnp.pad(qkv, ((0, 0), (0, 0), (0, 0), (0, n_pad - N), (0, 0)))

    w_proj_h = w_proj.reshape(num_heads, head_dim, C)
    b_proj = params["b_proj"].reshape(1, C).astype(jnp.float32)

    out = attention_proj(
        qkv, w_proj_h, b_proj,
        num_heads=num_heads, head_dim=head_dim, dim=C,
        n_valid=N, n_pad=n_pad, scale=scale, out_dtype=out_dtype,
    )
    if n_pad != N:
        out = out[:, :N, :]
    # attn_drop / proj_drop have p=0.0 -> identity at inference.
    return out


# ---------------------------------------------------------------------------
# Pure-JAX reference for sanity checking
# ---------------------------------------------------------------------------
def qattention_ref(x, params, num_heads):
    B, N, C = x.shape
    head_dim = C // num_heads
    scale = head_dim ** (-0.5)
    qkv = x.reshape(B * N, C) @ params["w_qkv"]
    qkv = qkv.reshape(B, N, 3, num_heads, head_dim).transpose(2, 0, 3, 1, 4)
    q, k, v = qkv[0], qkv[1], qkv[2]
    s = jnp.einsum("bhnd,bhmd->bhnm", q * scale, k)
    p = jax.nn.softmax(s, axis=-1)
    o = jnp.einsum("bhnm,bhmd->bhnd", p, v)
    o = o.transpose(0, 2, 1, 3).reshape(B, N, C)
    return o @ params["w_proj"] + params["b_proj"]


if __name__ == "__main__":
    B, N, num_heads, head_dim = 2, 8, 4, 8
    C = num_heads * head_dim  # 32

    key = jax.random.PRNGKey(0)
    kx, kw1, kw2, kb = jax.random.split(key, 4)

    x = jax.random.normal(kx, (B, N, C), dtype=jnp.float32)
    params = {
        # stored (in, out); equals torch Linear weight (out, in) transposed
        "w_qkv": jax.random.normal(kw1, (C, 3 * C), dtype=jnp.float32) * 0.05,
        "w_proj": jax.random.normal(kw2, (C, C), dtype=jnp.float32) * 0.05,
        "b_proj": jax.random.normal(kb, (C,), dtype=jnp.float32) * 0.05,
    }

    fwd = jax.jit(functools.partial(qattention_forward, num_heads=num_heads))
    out = fwd(x, params)
    out = jax.block_until_ready(out)

    ref = qattention_ref(x, params, num_heads)
    assert out.shape == (B, N, C)
    # bf16 activations/weights with f32 accumulation -> relaxed tolerance.
    assert jnp.allclose(out.astype(jnp.float32), ref, atol=3e-2, rtol=3e-2), (
        "mismatch vs reference, max abs err "
        f"{float(jnp.max(jnp.abs(out.astype(jnp.float32) - ref)))}"
    )

    print("KERNEL_OK")
</pallas_src>

<mosaic_0001>
module attributes {stable_mosaic.version = 11 : i64} {
  func.func @_matmul_kernel(%arg0: i32, %arg1: i32, %arg2: i32, %arg3: memref<16x128xbf16, #tpu.memory_space<vmem>>, %arg4: memref<128x128xbf16, #tpu.memory_space<vmem>>, %arg5: memref<16x128xbf16, #tpu.memory_space<vmem>>, %arg6: memref<16x128xf32, #tpu.memory_space<vmem>>) attributes {dimension_semantics = [#tpu.dimension_semantics<parallel>, #tpu.dimension_semantics<parallel>, #tpu.dimension_semantics<arbitrary>], iteration_bounds = array<i64: 1, 1, 1>, scalar_prefetch = 0 : i64, scratch_operands = 1 : i64, tpu.core_type = #tpu.core_type<tc>, window_params = [{transform_indices = @transform_0, window_bounds = array<i64: 16, 128>}, {transform_indices = @transform_1, window_bounds = array<i64: 128, 128>}, {transform_indices = @transform_2, window_bounds = array<i64: 16, 128>}]} {
    %c0_i32 = arith.constant 0 : i32
    %0 = arith.cmpi eq, %arg2, %c0_i32 : i32
    %1 = arith.extui %0 : i1 to i32
    %c0_i32_0 = arith.constant 0 : i32
    %2 = arith.cmpi ne, %1, %c0_i32_0 : i32
    scf.if %2 {
      %cst_10 = arith.constant 0.000000e+00 : f32
      %12 = vector.broadcast %cst_10 : f32 to vector<16x128xf32>
      %c0_11 = arith.constant 0 : index
      %c0_12 = arith.constant 0 : index
      %13 = vector.load %arg6[%c0_11, %c0_12] : memref<16x128xf32, #tpu.memory_space<vmem>>, vector<16x128xf32>
      tpu.vector_store %arg6[%c0_11, %c0_12], %12 {strides = array<i32>} : memref<16x128xf32, #tpu.memory_space<vmem>>, vector<16x128xf32>,
    } else {
    }
    %c0 = arith.constant 0 : index
    %c0_1 = arith.constant 0 : index
    %3 = vector.load %arg6[%c0, %c0_1] : memref<16x128xf32, #tpu.memory_space<vmem>>, vector<16x128xf32>
    %c0_2 = arith.constant 0 : index
    %c0_3 = arith.constant 0 : index
    %4 = vector.load %arg3[%c0_2, %c0_3] : memref<16x128xbf16, #tpu.memory_space<vmem>>, vector<16x128xbf16>
    %c0_4 = arith.constant 0 : index
    %c0_5 = arith.constant 0 : index
    %5 = vector.load %arg4[%c0_4, %c0_5] : memref<128x128xbf16, #tpu.memory_space<vmem>>, vector<128x128xbf16>
    %cst = arith.constant dense<0.000000e+00> : vector<16x128xf32>
    %6 = tpu.matmul %4, %5, %cst {dimension_numbers = #tpu.dot_dimension_numbers<[1], [0], [0], [1], [0, 0, 1, 1], [], []>} : vector<16x128xbf16>, vector<128x128xbf16>, vector<16x128xf32> -> vector<16x128xf32>
    %7 = arith.addf %3, %6 : vector<16x128xf32>
    %c0_6 = arith.constant 0 : index
    %c0_7 = arith.constant 0 : index
    %8 = vector.load %arg6[%c0_6, %c0_7] : memref<16x128xf32, #tpu.memory_space<vmem>>, vector<16x128xf32>
    tpu.vector_store %arg6[%c0_6, %c0_7], %7 {strides = array<i32>} : memref<16x128xf32, #tpu.memory_space<vmem>>, vector<16x128xf32>,
    %c0_i32_8 = arith.constant 0 : i32
    %9 = arith.cmpi eq, %arg2, %c0_i32_8 : i32
    %10 = arith.extui %9 : i1 to i32
    %c0_i32_9 = arith.constant 0 : i32
    %11 = arith.cmpi ne, %10, %c0_i32_9 : i32
    scf.if %11 {
      %c0_10 = arith.constant 0 : index
      %c0_11 = arith.constant 0 : index
      %12 = vector.load %arg6[%c0_10, %c0_11] : memref<16x128xf32, #tpu.memory_space<vmem>>, vector<16x128xf32>
      %13 = arith.truncf %12 : vector<16x128xf32> to vector<16x128xbf16>
      %c0_12 = arith.constant 0 : index
      %c0_13 = arith.constant 0 : index
      %14 = vector.load %arg5[%c0_12, %c0_13] : memref<16x128xbf16, #tpu.memory_space<vmem>>, vector<16x128xbf16>
      tpu.vector_store %arg5[%c0_12, %c0_13], %13 {strides = array<i32>} : memref<16x128xbf16, #tpu.memory_space<vmem>>, vector<16x128xbf16>,
    } else {
    }
    return
  }
  func.func @transform_0(%arg0: i32, %arg1: i32, %arg2: i32) -> (i32, i32) {
    %c0_i32 = arith.constant 0 : i32
    return %arg0, %arg2 : i32, i32
  }
  func.func @transform_1(%arg0: i32, %arg1: i32, %arg2: i32) -> (i32, i32) {
    %c0_i32 = arith.constant 0 : i32
    return %arg2, %arg1 : i32, i32
  }
  func.func @transform_2(%arg0: i32, %arg1: i32, %arg2: i32) -> (i32, i32) {
    %c0_i32 = arith.constant 0 : i32
    return %arg0, %arg1 : i32, i32
  }
}

module attributes {stable_mosaic.version = 11 : i64} {
  func.func @kernel(%arg0: i32, %arg1: i32, %arg2: memref<1x3x1x128x8xbf16, #tpu.memory_space<vmem>>, %arg3: memref<1x8x32xbf16, #tpu.memory_space<vmem>>, %arg4: memref<1x32xf32, #tpu.memory_space<vmem>>, %arg5: memref<1x128x32xf32, #tpu.memory_space<vmem>>, %arg6: memref<128x32xf32, #tpu.memory_space<vmem>>) attributes {dimension_semantics = [#tpu.dimension_semantics<parallel>, #tpu.dimension_semantics<arbitrary>], iteration_bounds = array<i64: 2, 4>, scalar_prefetch = 0 : i64, scratch_operands = 1 : i64, tpu.core_type = #tpu.core_type<tc>, window_params = [{transform_indices = @transform_0, window_bounds = array<i64: 1, 3, 1, 128, 8>}, {transform_indices = @transform_1, window_bounds = array<i64: 1, 8, 32>}, {pipeline_mode = #tpu.pipeline_mode<synchronous>, transform_indices = @transform_2, window_bounds = array<i64: 1, 32>}, {transform_indices = @transform_3, window_bounds = array<i64: 1, 128, 32>}]} {
    %c0_i32 = arith.constant 0 : i32
    %0 = arith.cmpi eq, %arg1, %c0_i32 : i32
    %1 = arith.extui %0 : i1 to i32
    %c0_i32_0 = arith.constant 0 : i32
    %2 = arith.cmpi ne, %1, %c0_i32_0 : i32
    scf.if %2 {
      %cst_27 = arith.constant 0.000000e+00 : f32
      %39 = vector.broadcast %cst_27 : f32 to vector<128x32xf32>
      %c0_28 = arith.constant 0 : index
      %c0_29 = arith.constant 0 : index
      %40 = vector.load %arg6[%c0_28, %c0_29] : memref<128x32xf32, #tpu.memory_space<vmem>>, vector<128x32xf32>
      tpu.vector_store %arg6[%c0_28, %c0_29], %39 {strides = array<i32>} : memref<128x32xf32, #tpu.memory_space<vmem>>, vector<128x32xf32>,
    } else {
    }
    %c0 = arith.constant 0 : index
    %c0_1 = arith.constant 0 : index
    %c0_2 = arith.constant 0 : index
    %c0_3 = arith.constant 0 : index
    %c0_4 = arith.constant 0 : index
    %3 = vector.load %arg2[%c0, %c0_1, %c0_2, %c0_3, %c0_4] : memref<1x3x1x128x8xbf16, #tpu.memory_space<vmem>>, vector<1x1x1x128x8xbf16>
    %4 = vector.shape_cast %3 : vector<1x1x1x128x8xbf16> to vector<128x8xbf16>
    %cst = arith.constant 3.535160e-01 : bf16
    %5 = vector.broadcast %cst : bf16 to vector<128x8xbf16>
    %6 = arith.mulf %4, %5 : vector<128x8xbf16>
    %c0_5 = arith.constant 0 : index
    %c1 = arith.constant 1 : index
    %c0_6 = arith.constant 0 : index
    %c0_7 = arith.constant 0 : index
    %c0_8 = arith.constant 0 : index
    %7 = vector.load %arg2[%c0_5, %c1, %c0_6, %c0_7, %c0_8] : memref<1x3x1x128x8xbf16, #tpu.memory_space<vmem>>, vector<1x1x1x128x8xbf16>
    %8 = vector.shape_cast %7 : vector<1x1x1x128x8xbf16> to vector<128x8xbf16>
    %c0_9 = arith.constant 0 : index
    %c2 = arith.constant 2 : index
    %c0_10 = arith.constant 0 : index
    %c0_11 = arith.constant 0 : index
    %c0_12 = arith.constant 0 : index
    %9 = vector.load %arg2[%c0_9, %c2, %c0_10, %c0_11, %c0_12] : memref<1x3x1x128x8xbf16, #tpu.memory_space<vmem>>, vector<1x1x1x128x8xbf16>
    %10 = vector.shape_cast %9 : vector<1x1x1x128x8xbf16> to vector<128x8xbf16>
    %cst_13 = arith.constant dense<0.000000e+00> : vector<128x128xf32>
    %11 = tpu.matmul %6, %8, %cst_13 {dimension_numbers = #tpu.dot_dimension_numbers<[1], [1], [0], [0], [0, 0, 1, 0], [], []>} : vector<128x8xbf16>, vector<128x8xbf16>, vector<128x128xf32> -> vector<128x128xf32>
    %12 = tpu.iota {dimensions = array<i32: 1>} : vector<128x128xi32>
    %c8_i32 = arith.constant 8 : i32
    %13 = vector.broadcast %c8_i32 : i32 to vector<128x128xi32>
    %14 = arith.cmpi slt, %12, %13 : vector<128x128xi32>
    %cst_14 = arith.constant -1.000000e+30 : f32
    %15 = vector.broadcast %cst_14 : f32 to vector<128x128xf32>
    %16 = arith.select %14, %11, %15 : vector<128x128xi1>, vector<128x128xf32>
    %cst_15 = arith.constant dense<0xFF800000> : vector<128xf32>
    %17 = vector.multi_reduction <maximumf>, %16, %cst_15 [1] : vector<128x128xf32> to vector<128xf32>
    %18 = vector.shape_cast %17 : vector<128xf32> to vector<128x1xf32>
    %19 = vector.broadcast %18 : vector<128x1xf32> to vector<128x128xf32>
    %20 = arith.subf %16, %19 : vector<128x128xf32>
    %21 = math.exp %20 : vector<128x128xf32>
    %cst_16 = arith.constant dense<0.000000e+00> : vector<128xf32>
    %22 = vector.multi_reduction <add>, %21, %cst_16 [1] : vector<128x128xf32> to vector<128xf32>
    %23 = vector.shape_cast %22 : vector<128xf32> to vector<128x1xf32>
    %24 = tpu.reciprocal %23 {approx = true} : vector<128x1xf32> -> vector<128x1xf32>
    %25 = vector.broadcast %24 : vector<128x1xf32> to vector<128x128xf32>
    %26 = arith.mulf %21, %25 : vector<128x128xf32>
    %27 = arith.truncf %26 : vector<128x128xf32> to vector<128x128xbf16>
    %cst_17 = arith.constant dense<0.000000e+00> : vector<128x8xf32>
    %28 = tpu.matmul %27, %10, %cst_17 {dimension_numbers = #tpu.dot_dimension_numbers<[1], [0], [0], [1], [0, 0, 1, 1], [], []>} : vector<128x128xbf16>, vector<128x8xbf16>, vector<128x8xf32> -> vector<128x8xf32>
    %c0_18 = arith.constant 0 : index
    %c0_19 = arith.constant 0 : index
    %29 = vector.load %arg6[%c0_18, %c0_19] : memref<128x32xf32, #tpu.memory_space<vmem>>, vector<128x32xf32>
    %30 = arith.truncf %28 : vector<128x8xf32> to vector<128x8xbf16>
    %c0_20 = arith.constant 0 : index
    %c0_21 = arith.constant 0 : index
    %c0_22 = arith.constant 0 : index
    %31 = vector.load %arg3[%c0_20, %c0_21, %c0_22] : memref<1x8x32xbf16, #tpu.memory_space<vmem>>, vector<1x8x32xbf16>
    %32 = vector.shape_cast %31 : vector<1x8x32xbf16> to vector<8x32xbf16>
    %cst_23 = arith.constant dense<0.000000e+00> : vector<128x32xf32>
    %33 = tpu.matmul %30, %32, %cst_23 {dimension_numbers = #tpu.dot_dimension_numbers<[1], [0], [0], [1], [0, 0, 1, 1], [], []>} : vector<128x8xbf16>, vector<8x32xbf16>, vector<128x32xf32> -> vector<128x32xf32>
    %34 = arith.addf %29, %33 : vector<128x32xf32>
    %c0_24 = arith.constant 0 : index
    %c0_25 = arith.constant 0 : index
    %35 = vector.load %arg6[%c0_24, %c0_25] : memref<128x32xf32, #tpu.memory_space<vmem>>, vector<128x32xf32>
    tpu.vector_store %arg6[%c0_24, %c0_25], %34 {strides = array<i32>} : memref<128x32xf32, #tpu.memory_space<vmem>>, vector<128x32xf32>,
    %c3_i32 = arith.constant 3 : i32
    %36 = arith.cmpi eq, %arg1, %c3_i32 : i32
    %37 = arith.extui %36 : i1 to i32
    %c0_i32_26 = arith.constant 0 : i32
    %38 = arith.cmpi ne, %37, %c0_i32_26 : i32
    scf.if %38 {
      %c0_27 = arith.constant 0 : index
      %c0_28 = arith.constant 0 : index
      %39 = vector.load %arg6[%c0_27, %c0_28] : memref<128x32xf32, #tpu.memory_space<vmem>>, vector<128x32xf32>
      %c0_29 = arith.constant 0 : index
      %c0_30 = arith.constant 0 : index
      %40 = vector.load %arg4[%c0_29, %c0_30] : memref<1x32xf32, #tpu.memory_space<vmem>>, vector<1x32xf32>
      %41 = vector.broadcast %40 : vector<1x32xf32> to vector<128x32xf32>
      %42 = arith.addf %39, %41 : vector<128x32xf32>
      %c0_31 = arith.constant 0 : index
      %c0_32 = arith.constant 0 : index
      %c0_33 = arith.constant 0 : index
      %43 = vector.load %arg5[%c0_31, %c0_32, %c0_33] : memref<1x128x32xf32, #tpu.memory_space<vmem>>, vector<1x128x32xf32>
      %44 = vector.shape_cast %43 : vector<1x128x32xf32> to vector<128x32xf32>
      %45 = vector.shape_cast %42 : vector<128x32xf32> to vector<1x128x32xf32>
      tpu.vector_store %arg5[%c0_31, %c0_32, %c0_33], %45 {strides = array<i32>} : memref<1x128x32xf32, #tpu.memory_space<vmem>>, vector<1x128x32xf32>,
    } else {
    }
    return
  }
  func.func @transform_0(%arg0: i32, %arg1: i32) -> (i32, i32, i32, i32, i32) {
    %c0_i32 = arith.constant 0 : i32
    %c0_i32_0 = arith.constant 0 : i32
    %c0_i32_1 = arith.constant 0 : i32
    %c0_i32_2 = arith.constant 0 : i32
    return %arg0, %c0_i32, %arg1, %c0_i32_0, %c0_i32_1 : i32, i32, i32, i32, i32
  }
  func.func @transform_1(%arg0: i32, %arg1: i32) -> (i32, i32, i32) {
    %c0_i32 = arith.constant 0 : i32
    %c0_i32_0 = arith.constant 0 : i32
    %c0_i32_1 = arith.constant 0 : i32
    return %arg1, %c0_i32, %c0_i32_0 : i32, i32, i32
  }
  func.func @transform_2(%arg0: i32, %arg1: i32) -> (i32, i32) {
    %c0_i32 = arith.constant 0 : i32
    %c0_i32_0 = arith.constant 0 : i32
    %c0_i32_1 = arith.constant 0 : i32
    return %c0_i32, %c0_i32_0 : i32, i32
  }
  func.func @transform_3(%arg0: i32, %arg1: i32) -> (i32, i32, i32) {
    %c0_i32 = arith.constant 0 : i32
    %c0_i32_0 = arith.constant 0 : i32
    %c0_i32_1 = arith.constant 0 : i32
    return %arg0, %c0_i32, %c0_i32_0 : i32, i32, i32
  }
}

</mosaic_0001>

<llo_original>
// kernel: qattention_forward.2
$region0: #{qattention_forward.2}
  #allocation0 [shape = 'u32[]', space=smem, size = 0x4, offset = 0x4, fixed_abs, tag = 'smem constant byte address 0x4 - core index']
  #allocation1 [shape = 'u32[144,128]{1,0:T(1,128)}', space=vmem, size = 0x12000, scoped, tag = 'internal scratch']
  #allocation2 [shape = 'f32[16,128]{1,0:T(8,128)}', space=vmem, size = 0x2000, scoped, tag = 'scratch operand']
  %s0 = inlined_call_operand.vmem [shape: bf16[16,128], index: 0, kind: input, shape index: {}]
  %s1 = inlined_call_operand.vmem [shape: bf16[128,128], index: 1, kind: input, shape index: {}]
  %s2 = inlined_call_operand.vmem [shape: bf16[16,128], index: 2, kind: output, shape index: {}]
  %s3 = sld [smem:[#allocation0]]
  $region26: #{qattention_forward.2} parent=0
    _
  %s5 = ssub.s32 1, %s3
  %s6 = scalar_select 0, %s5, %s3
  // Predicated region
  $region2: #{qattention_forward.2} parent=0 // pred_check
    _
  $region3: #{qattention_forward.2} parent=0 // pred_check_branch
    %8 = sbr.rel (0) target = $region5
  $region4: #{qattention_forward.2} parent=0 // pred_region
    _
  $region5: #{qattention_forward.2} parent=0 // pred_fallthru
    _
  // Predicated region
  $region6: #{qattention_forward.2} parent=0 // pred_check
    _
  $region7: #{qattention_forward.2} parent=0 // pred_check_branch
    %10 = sbr.rel (0) target = $region9
  $region8: #{qattention_forward.2} parent=0 // pred_region
    _
  $region9: #{qattention_forward.2} parent=0 // pred_fallthru
    _
  %p12 = scmp.eq.s32.totalorder 0, 0
  // Predicated region
  $region10: #{qattention_forward.2} parent=0 // pred_check
    %p13 = pneg %p12
  $region11: #{qattention_forward.2} parent=0 // pred_check_branch
    %15 = sbr.rel (%p13) target = $region13
  $region12: #{qattention_forward.2} parent=0 // pred_region
    %16 = vst [vmem:[#allocation2] sm:$0xff] 0.0
    %17 = vst [vmem:[#allocation2 + $0x8] sm:$0xff] 0.0
  $region13: #{qattention_forward.2} parent=0 // pred_fallthru
    _
  %v18 = vld [vmem:[#allocation2] sm:$0xff]
  %v19 = vld [vmem:[#allocation2 + $0x8] sm:$0xff]
  %v20 = vld [vmem:[%s0] sm:$0xf]
  %v21 = vld [vmem:[%s0 + $0x4] sm:$0xf]
  %v22 = vld [vmem:[%s1] sm:$0xf]
  %v23 = vld [vmem:[%s1 + $0x4] sm:$0xf]
  %v24 = vld [vmem:[%s1 + $0x8] sm:$0xf]
  %v25 = vld [vmem:[%s1 + $0xc] sm:$0xf]
  %v26 = vld [vmem:[%s1 + $0x10] sm:$0xf]
  %v27 = vld [vmem:[%s1 + $0x14] sm:$0xf]
  %v28 = vld [vmem:[%s1 + $0x18] sm:$0xf]
  %v29 = vld [vmem:[%s1 + $0x1c] sm:$0xf]
  %v30 = vld [vmem:[%s1 + $0x20] sm:$0xf]
  %v31 = vld [vmem:[%s1 + $0x24] sm:$0xf]
  %v32 = vld [vmem:[%s1 + $0x28] sm:$0xf]
  %v33 = vld [vmem:[%s1 + $0x2c] sm:$0xf]
  %v34 = vld [vmem:[%s1 + $0x30] sm:$0xf]
  %v35 = vld [vmem:[%s1 + $0x34] sm:$0xf]
  %v36 = vld [vmem:[%s1 + $0x38] sm:$0xf]
  %v37 = vld [vmem:[%s1 + $0x3c] sm:$0xf]
  %v40 = vunpack.c.l.b16 %v20
  %v41 = vunpack.c.l.b16 %v21
  %v42 = vpack.c.b16 %v41, %v40
  %v60 = vunpack.c.l.b16 %v22
  %v61 = vunpack.c.l.b16 %v23
  %v62 = vunpack.c.l.b16 %v24
  %v63 = vunpack.c.l.b16 %v25
  %v64 = vunpack.c.l.b16 %v26
  %v65 = vunpack.c.l.b16 %v27
  %v66 = vunpack.c.l.b16 %v28
  %v67 = vunpack.c.l.b16 %v29
  %v68 = vunpack.c.l.b16 %v30
  %v69 = vunpack.c.l.b16 %v31
  %v70 = vunpack.c.l.b16 %v32
  %v71 = vunpack.c.l.b16 %v33
  %v72 = vunpack.c.l.b16 %v34
  %v73 = vunpack.c.l.b16 %v35
  %v74 = vunpack.c.l.b16 %v36
  %v75 = vunpack.c.l.b16 %v37
  %v76 = vpack.c.b16 %v61, %v60
  %v77 = vpack.c.b16 %v63, %v62
  %v78 = vpack.c.b16 %v65, %v64
  %v79 = vpack.c.b16 %v67, %v66
  %v80 = vpack.c.b16 %v69, %v68
  %v81 = vpack.c.b16 %v71, %v70
  %v82 = vpack.c.b16 %v73, %v72
  %v83 = vpack.c.b16 %v75, %v74
  %92 = vmatprep.subr.bf16.mxu0 0
  %93 = vmatpush1.bf16.msra.mxu0 %v76
  %94 = vmatprep.subr.bf16.mxu0 0
  %95 = vmatpush1.bf16.msra.mxu0 %v77
  %96 = vmatprep.subr.bf16.mxu0 0
  %97 = vmatpush1.bf16.msra.mxu0 %v78
  %98 = vmatprep.subr.bf16.mxu0 0
  %99 = vmatpush1.bf16.msra.mxu0 %v79
  %100 = vmatprep.subr.bf16.mxu0 0
  %101 = vmatpush1.bf16.msra.mxu0 %v80
  %102 = vmatprep.subr.bf16.mxu0 0
  %103 = vmatpush1.bf16.msra.mxu0 %v81
  %104 = vmatprep.subr.bf16.mxu0 0
  %105 = vmatpush1.bf16.msra.mxu0 %v82
  %106 = vmatprep.subr.bf16.mxu0 0
  %107 = vmatpush1.bf16.msra.mxu0 %v83
  %108 = vmatprep.subr.bf16.mxu0 0
  %109 = vmatpush1.bf16.msra.mxu0 0
  %110 = vmatprep.subr.bf16.mxu0 0
  %111 = vmatpush1.bf16.msra.mxu0 0
  %112 = vmatprep.subr.bf16.mxu0 0
  %113 = vmatpush1.bf16.msra.mxu0 0
  %114 = vmatprep.subr.bf16.mxu0 0
  %115 = vmatpush1.bf16.msra.mxu0 0
  %116 = vmatprep.subr.bf16.mxu0 0
  %117 = vmatpush1.bf16.msra.mxu0 0
  %118 = vmatprep.subr.bf16.mxu0 0
  %119 = vmatpush1.bf16.msra.mxu0 0
  %120 = vmatprep.subr.bf16.mxu0 0
  %121 = vmatpush1.bf16.msra.mxu0 0
  %122 = vmatprep.subr.bf16.mxu0 0
  %123 = vmatpush1.bf16.msra.mxu0 0
  %124 = vmatprep.mubr.bf16.mxu0 0
  %125 = vmatmul.mubr.bf16.gmra.mrb[0].mxu0 %v42
  %v126 = vpop.f32.mrb[0].mxu0
  %v127 = vadd.f32 0.0, %v126
  %v128 = vpop.f32.mrb[0].mxu0
  %v129 = vpop.f32.mrb[0].mxu0
  %v130 = vadd.f32 0.0, %v129
  %v131 = vpop.f32.mrb[0].mxu0
  %132 = vdwg.mxu0
  %v133 = vadd.f32 %v18, %v127
  %v134 = vadd.f32 %v19, %v130
  %135 = vst [vmem:[#allocation2] sm:$0xff] %v133
  %136 = vst [vmem:[#allocation2 + $0x8] sm:$0xff] %v134
  // Predicated region
  $region14: #{qattention_forward.2} parent=0 // pred_check
    %p137 = pneg %p12
  $region15: #{qattention_forward.2} parent=0 // pred_check_branch
    %139 = sbr.rel (%p137) target = $region17
  $region16: #{qattention_forward.2} parent=0 // pred_region
    %v140 = vld [vmem:[#allocation2] sm:$0xff]
    %v141 = vld [vmem:[#allocation2 + $0x8] sm:$0xff]
    %v142 = vpack.c.bf16 %v141, %v140
    %v144 = vunpack.c.l.b16 %v142
    %v145 = vunpack.c.h.b16 %v142
    %v146 = vpack.c.b16 %v144, %v144
    %v147 = vpack.c.b16 %v145, %v145
    %150 = vst [vmem:[%s2] sm:$0xf] %v146
    %151 = vst [vmem:[%s2 + $0x4] sm:$0xf] %v147
  $region17: #{qattention_forward.2} parent=0 // pred_fallthru
    _
  // Predicated region
  $region18: #{qattention_forward.2} parent=0 // pred_check
    _
  $region19: #{qattention_forward.2} parent=0 // pred_check_branch
    %153 = sbr.rel (0) target = $region21
  $region20: #{qattention_forward.2} parent=0 // pred_region
    _
  $region21: #{qattention_forward.2} parent=0 // pred_fallthru
    _
  // Predicated region
  $region22: #{qattention_forward.2} parent=0 // pred_check
    _
  $region23: #{qattention_forward.2} parent=0 // pred_check_branch
    %155 = sbr.rel (0) target = $region25
  $region24: #{qattention_forward.2} parent=0 // pred_region
    _
  $region25: #{qattention_forward.2} parent=0 // pred_fallthru
    _

// kernel: qattention_forward.3
$region0: #{qattention_forward.3}
  #allocation0 [shape = 'u32[]', space=smem, size = 0x4, offset = 0x4, fixed_abs, tag = 'smem constant byte address 0x4 - core index']
  #allocation1 [shape = 'u32[144,128]{1,0:T(1,128)}', space=vmem, size = 0x12000, scoped, tag = 'internal scratch']
  #allocation2 [shape = 'f32[128,32]{1,0:T(8,128)}', space=vmem, size = 0x10000, scoped, tag = 'scratch operand']
  %s0 = inlined_call_operand.vmem [shape: bf16[2,3,4,128,8], index: 0, kind: input, shape index: {}]
  %s1 = inlined_call_operand.vmem [shape: bf16[4,8,32], index: 1, kind: input, shape index: {}]
  %s2 = inlined_call_operand.vmem [shape: f32[1,32], index: 2, kind: input, shape index: {}]
  %s3 = inlined_call_operand.vmem [shape: f32[2,128,32], index: 3, kind: output, shape index: {}]
  %s4 = sld [smem:[#allocation0]]
  $region94: #{qattention_forward.3} parent=0
    _
  %s6 = ssub.s32 1, %s4
  %s7 = scalar_select 0, %s6, %s4
  $region1: #{qattention_forward.3} parent=0
    #allocation3 [shape = 'u8[196608]{0}', space=vmem, size = 0x30000, scoped, tag = 'input window, operand 0']
    loop: start=0, step=1, limit=10
    $region2: #{qattention_forward.3} parent=1 // loop_pre_header
      _
    $region3: #{qattention_forward.3} parent=1 // loop_header
      %s9 = sphi 0, %s13
      %p10 = scmp.ge.s32.totalorder %s9, 10
      %s16 = sphi 0, %s28
      %s17 = sphi 0, %s24
      %s18 = sphi 0, %s16
      %s19 = sphi 0, %s17
      %s20 = sphi 0, %s18
      %s21 = sphi 0, %s19
      %s33 = sphi 0, %s35
      %s36 = sphi 0, %s33
      %s37 = sphi 0, %s36
      %s53 = sphi 0, %s37
      %s59 = sphi 0, %s61
      %s62 = sphi 0, %s59
      %s63 = sphi 0, %s62
      %s79 = sphi 0, %s63
      %s83 = sphi 0, %s83
      %s85 = sphi 0, %s83
      %s86 = sphi 0, %s85
      %s100 = sphi 0, %s86
      %s106 = sphi 0, %s108
      %s109 = sphi 0, %s106
      %s110 = sphi 0, %s109
      %s126 = sphi 0, %s110
    $region4: #{qattention_forward.3} parent=1 // loop_header_branch
      %12 = sbr.rel (%p10) target = $region8
    $region5: #{qattention_forward.3} parent=1 // loop_body
      %s14 = ssub.s32 %s9, 1
      %s15 = ssub.s32 %s9, 2
      %s22 = sadd.s32 1, %s17
      %p23 = scmp.ge.s32.totalorder %s22, 4
      %s24 = scalar_select %p23, 0, %s22
      %s25 = sadd.s32 1, %s16
      %s26 = scalar_select %p23, %s25, %s16
      %p27 = scmp.ge.s32.totalorder %s26, 2
      %s28 = scalar_select %p27, 0, %s26
      %s29 = ssub.s32 %s16, %s28
      %s30 = ssub.s32 %s17, %s24
      %s31 = sor.u32 %s29, %s30
      %p32 = scmp.eq.s32.totalorder %s31, 0
      %s34 = sadd.s32 %s33, 1
      %s35 = scalar_select %p32, %s33, %s34
      %p38 = pneg %p32
      %p39 = scmp.eq.s32.totalorder %s9, 7
      %p40 = por %p38, %p39
      %p41 = scmp.ne.s32.totalorder %s33, %s36
      %p42 = scmp.eq.s32.totalorder %s9, 0
      %p43 = por %p41, %p42
      %p44 = scmp.ne.s32.totalorder %s33, %s36
      %p45 = scmp.eq.s32.totalorder %s14, 7
      %p46 = por %p44, %p45
      %p47 = scmp.ne.s32.totalorder %s36, %s37
      %p48 = scmp.eq.s32.totalorder %s14, 0
      %p49 = por %p47, %p48
      %p50 = scmp.ne.s32.totalorder %s36, %s37
      %p51 = scmp.eq.s32.totalorder %s15, 7
      %p52 = por %p50, %p51
      %p54 = scmp.ne.s32.totalorder %s37, %s53
      %p55 = scmp.eq.s32.totalorder %s15, 0
      %p56 = por %p54, %p55
      %s57 = ssub.s32 %s17, %s24
      %p58 = scmp.eq.s32.totalorder %s57, 0
      %s60 = sadd.s32 %s59, 1
      %s61 = scalar_select %p58, %s59, %s60
      %p64 = pneg %p58
      %p65 = scmp.eq.s32.totalorder %s9, 7
      %p66 = por %p64, %p65
      %p67 = scmp.ne.s32.totalorder %s59, %s62
      %p68 = scmp.eq.s32.totalorder %s9, 0
      %p69 = por %p67, %p68
      %p70 = scmp.ne.s32.totalorder %s59, %s62
      %p71 = scmp.eq.s32.totalorder %s14, 7
      %p72 = por %p70, %p71
      %p73 = scmp.ne.s32.totalorder %s62, %s63
      %p74 = scmp.eq.s32.totalorder %s14, 0
      %p75 = por %p73, %p74
      %p76 = scmp.ne.s32.totalorder %s62, %s63
      %p77 = scmp.eq.s32.totalorder %s15, 7
      %p78 = por %p76, %p77
      %p80 = scmp.ne.s32.totalorder %s63, %s79
      %p81 = scmp.eq.s32.totalorder %s15, 0
      %p82 = por %p80, %p81
      %s84 = sadd.s32 %s83, 1
      %p87 = scmp.eq.s32.totalorder %s9, 7
      %p88 = scmp.ne.s32.totalorder %s83, %s85
      %p89 = scmp.eq.s32.totalorder %s9, 0
      %p90 = por %p88, %p89
      %p91 = scmp.ne.s32.totalorder %s83, %s85
      %p92 = scmp.eq.s32.totalorder %s14, 7
      %p93 = por %p91, %p92
      %p94 = scmp.ne.s32.totalorder %s85, %s86
      %p95 = scmp.eq.s32.totalorder %s14, 0
      %p96 = por %p94, %p95
      %p97 = scmp.ne.s32.totalorder %s85, %s86
      %p98 = scmp.eq.s32.totalorder %s15, 7
      %p99 = por %p97, %p98
      %p101 = scmp.ne.s32.totalorder %s86, %s100
      %p102 = scmp.eq.s32.totalorder %s15, 0
      %p103 = por %p101, %p102
      %s104 = ssub.s32 %s16, %s28
      %p105 = scmp.eq.s32.totalorder %s104, 0
      %s107 = sadd.s32 %s106, 1
      %s108 = scalar_select %p105, %s106, %s107
      %p111 = pneg %p105
      %p112 = scmp.eq.s32.totalorder %s9, 7
      %p113 = por %p111, %p112
      %p114 = scmp.ne.s32.totalorder %s106, %s109
      %p115 = scmp.eq.s32.totalorder %s9, 0
      %p116 = por %p114, %p115
      %p117 = scmp.ne.s32.totalorder %s106, %s109
      %p118 = scmp.eq.s32.totalorder %s14, 7
      %p119 = por %p117, %p118
      %p120 = scmp.ne.s32.totalorder %s109, %s110
      %p121 = scmp.eq.s32.totalorder %s14, 0
      %p122 = por %p120, %p121
      %p123 = scmp.ne.s32.totalorder %s109, %s110
      %p124 = scmp.eq.s32.totalorder %s15, 7
      %p125 = por %p123, %p124
      %p127 = scmp.ne.s32.totalorder %s110, %s126
      %p128 = scmp.eq.s32.totalorder %s15, 0
      %p129 = por %p127, %p128
      %p130 = scmp.le.s32.totalorder 1, %s9
      %p131 = scmp.lt.s32.totalorder %s9, 9
      %p132 = pnand %p130, %p131
      %p133 = pneg %p132
      // Predicated region
      $region9: #{qattention_forward.3} parent=5 // pred_check
        _
      $region10: #{qattention_forward.3} parent=5 // pred_check_branch
        %135 = sbr.rel (%p132) target = $region12
      $region11: #{qattention_forward.3} parent=5 // pred_region
        %s136 = ssub.s32 %s9, 1
        // Predicated region
        $region13: #{qattention_forward.3} parent=11 // pred_check
          %p137 = pneg %p96
        $region14: #{qattention_forward.3} parent=11 // pred_check_branch
          %139 = sbr.rel (%p137) target = $region16
        $region15: #{qattention_forward.3} parent=11 // pred_region
          _
        $region16: #{qattention_forward.3} parent=11 // pred_fallthru
          _
      $region12: #{qattention_forward.3} parent=5 // pred_fallthru
        _
      %p140 = scmp.lt.s32.totalorder %s9, 8
      // Predicated region
      $region17: #{qattention_forward.3} parent=5 // pred_check
        %p141 = pneg %p140
      $region18: #{qattention_forward.3} parent=5 // pred_check_branch
        %143 = sbr.rel (%p141) target = $region20
      $region19: #{qattention_forward.3} parent=5 // pred_region
        // Predicated region
        $region21: #{qattention_forward.3} parent=19 // pred_check
          %p144 = pneg %p43
        $region22: #{qattention_forward.3} parent=19 // pred_check_branch
          %146 = sbr.rel (%p144) target = $region24
        $region23: #{qattention_forward.3} parent=19 // pred_region
          %s147 = sand.u32 %s33, 1
          %s148 = sand.u32 %s33, 1
          %s149 = smul.addr %s148, 192
          %s150 = scalar_lea.vmem [#allocation3], %s149
          %s151 = smul.addr %s17, 16
          %s152 = smul.addr %s16, 192
          %s153 = sadd.s32 %s151, %s152
          %s154 = smul.addr %s153, 4
          %s155 = scalar_lea.vmem %s0, %s154
          // Predicated region
          $region25: #{qattention_forward.3} parent=23 // pred_check
            _
          $region26: #{qattention_forward.3} parent=23 // pred_check_branch
            %157 = sbr.rel (0) target = $region28
          $region27: #{qattention_forward.3} parent=23 // pred_region
            // Predicated region
            $region29: #{qattention_forward.3} parent=27 // pred_check
              _
            $region30: #{qattention_forward.3} parent=27 // pred_check_branch
              %159 = sbr.rel target = $region32
            $region31: #{qattention_forward.3} parent=27 // pred_region
              // Predicated region
              $region44: #{qattention_forward.3} parent=31 // pred_check
                _
              $region45: #{qattention_forward.3} parent=31 // pred_check_branch
                %268 = sbr.rel (0) target = $region47
              $region46: #{qattention_forward.3} parent=31 // pred_region
                loop: start=0, step=1, limit=1
                $region48: #{qattention_forward.3} parent=46 // loop_pre_header
                  _
                $region49: #{qattention_forward.3} parent=46 // loop_header
                  %s270 = sphi 0, %s274
                  %p271 = scmp.ge.s32.totalorder %s270, 1
                  %s275 = sphi %s155, %s155
                  %s276 = sphi %s150, %s150
                $region50: #{qattention_forward.3} parent=46 // loop_header_branch
                  %273 = sbr.rel (%p271) target = $region54
                $region51: #{qattention_forward.3} parent=46 // loop_body
                  _
                $region52: #{qattention_forward.3} parent=46 // loop_footer
                  %s274 = sadd.s32 1, %s270
                $region53: #{qattention_forward.3} parent=46 // loop_footer_branch
                  %269 = sbr.rel target = $region49
                $region54: #{qattention_forward.3} parent=46 // loop_exit
                  _
                loop: start=0, step=1, limit=1
                $region55: #{qattention_forward.3} parent=46 // loop_pre_header
                  _
                $region56: #{qattention_forward.3} parent=46 // loop_header
                  %s279 = sphi 0, %s283
                  %p280 = scmp.ge.s32.totalorder %s279, 1
                  %s284 = sphi %s155, %s155
                  %s285 = sphi %s150, %s150
                $region57: #{qattention_forward.3} parent=46 // loop_header_branch
                  %282 = sbr.rel (%p280) target = $region61
                $region58: #{qattention_forward.3} parent=46 // loop_body
                  %v286 = vld [vmem:[%s284] sm:$0xf]
                  %287 = vst [vmem:[%s285] sm:$0xf] %v286
                  %v288 = vld [vmem:[%s284 + $0x4] sm:$0xf]
                  %289 = vst [vmem:[%s285 + $0x4] sm:$0xf] %v288
                  %v290 = vld [vmem:[%s284 + $0x8] sm:$0xf]
                  %291 = vst [vmem:[%s285 + $0x8] sm:$0xf] %v290
                  %v292 = vld [vmem:[%s284 + $0xc] sm:$0xf]
                  %293 = vst [vmem:[%s285 + $0xc] sm:$0xf] %v292
                  %v294 = vld [vmem:[%s284 + $0x10] sm:$0xf]
                  %295 = vst [vmem:[%s285 + $0x10] sm:$0xf] %v294
                  %v296 = vld [vmem:[%s284 + $0x14] sm:$0xf]
                  %297 = vst [vmem:[%s285 + $0x14] sm:$0xf] %v296
                  %v298 = vld [vmem:[%s284 + $0x18] sm:$0xf]
                  %299 = vst [vmem:[%s285 + $0x18] sm:$0xf] %v298
                  %v300 = vld [vmem:[%s284 + $0x1c] sm:$0xf]
                  %301 = vst [vmem:[%s285 + $0x1c] sm:$0xf] %v300
                  %v302 = vld [vmem:[%s284 + $0x20] sm:$0xf]
                  %303 = vst [vmem:[%s285 + $0x20] sm:$0xf] %v302
                  %v304 = vld [vmem:[%s284 + $0x24] sm:$0xf]
                  %305 = vst [vmem:[%s285 + $0x24] sm:$0xf] %v304
                  %v306 = vld [vmem:[%s284 + $0x28] sm:$0xf]
                  %307 = vst [vmem:[%s285 + $0x28] sm:$0xf] %v306
                  %v308 = vld [vmem:[%s284 + $0x2c] sm:$0xf]
                  %309 = vst [vmem:[%s285 + $0x2c] sm:$0xf] %v308
                  %v310 = vld [vmem:[%s284 + $0x30] sm:$0xf]
                  %311 = vst [vmem:[%s285 + $0x30] sm:$0xf] %v310
                  %v312 = vld [vmem:[%s284 + $0x34] sm:$0xf]
                  %313 = vst [vmem:[%s285 + $0x34] sm:$0xf] %v312
                  %v314 = vld [vmem:[%s284 + $0x38] sm:$0xf]
                  %315 = vst [vmem:[%s285 + $0x38] sm:$0xf] %v314
                  %v316 = vld [vmem:[%s284 + $0x3c] sm:$0xf]
                  %317 = vst [vmem:[%s285 + $0x3c] sm:$0xf] %v316
                  %v318 = vld [vmem:[%s284 + $0x100] sm:$0xf]
                  %319 = vst [vmem:[%s285 + $0x40] sm:$0xf] %v318
                  %v320 = vld [vmem:[%s284 + $0x104] sm:$0xf]
                  %321 = vst [vmem:[%s285 + $0x44] sm:$0xf] %v320
                  %v322 = vld [vmem:[%s284 + $0x108] sm:$0xf]
                  %323 = vst [vmem:[%s285 + $0x48] sm:$0xf] %v322
                  %v324 = vld [vmem:[%s284 + $0x10c] sm:$0xf]
                  %325 = vst [vmem:[%s285 + $0x4c] sm:$0xf] %v324
                  %v326 = vld [vmem:[%s284 + $0x110] sm:$0xf]
                  %327 = vst [vmem:[%s285 + $0x50] sm:$0xf] %v326
                  %v328 = vld [vmem:[%s284 + $0x114] sm:$0xf]
                  %329 = vst [vmem:[%s285 + $0x54] sm:$0xf] %v328
                  %v330 = vld [vmem:[%s284 + $0x118] sm:$0xf]
                  %331 = vst [vmem:[%s285 + $0x58] sm:$0xf] %v330
                  %v332 = vld [vmem:[%s284 + $0x11c] sm:$0xf]
                  %333 = vst [vmem:[%s285 + $0x5c] sm:$0xf] %v332
                  %v334 = vld [vmem:[%s284 + $0x120] sm:$0xf]
                  %335 = vst [vmem:[%s285 + $0x60] sm:$0xf] %v334
                  %v336 = vld [vmem:[%s284 + $0x124] sm:$0xf]
                  %337 = vst [vmem:[%s285 + $0x64] sm:$0xf] %v336
                  %v338 = vld [vmem:[%s284 + $0x128] sm:$0xf]
                  %339 = vst [vmem:[%s285 + $0x68] sm:$0xf] %v338
                  %v340 = vld [vmem:[%s284 + $0x12c] sm:$0xf]
                  %341 = vst [vmem:[%s285 + $0x6c] sm:$0xf] %v340
                  %v342 = vld [vmem:[%s284 + $0x130] sm:$0xf]
                  %343 = vst [vmem:[%s285 + $0x70] sm:$0xf] %v342
                  %v344 = vld [vmem:[%s284 + $0x134] sm:$0xf]
                  %345 = vst [vmem:[%s285 + $0x74] sm:$0xf] %v344
                  %v346 = vld [vmem:[%s284 + $0x138] sm:$0xf]
                  %347 = vst [vmem:[%s285 + $0x78] sm:$0xf] %v346
                  %v348 = vld [vmem:[%s284 + $0x13c] sm:$0xf]
                  %349 = vst [vmem:[%s285 + $0x7c] sm:$0xf] %v348
                  %v350 = vld [vmem:[%s284 + $0x200] sm:$0xf]
                  %351 = vst [vmem:[%s285 + $0x80] sm:$0xf] %v350
                  %v352 = vld [vmem:[%s284 + $0x204] sm:$0xf]
                  %353 = vst [vmem:[%s285 + $0x84] sm:$0xf] %v352
                  %v354 = vld [vmem:[%s284 + $0x208] sm:$0xf]
                  %355 = vst [vmem:[%s285 + $0x88] sm:$0xf] %v354
                  %v356 = vld [vmem:[%s284 + $0x20c] sm:$0xf]
                  %357 = vst [vmem:[%s285 + $0x8c] sm:$0xf] %v356
                  %v358 = vld [vmem:[%s284 + $0x210] sm:$0xf]
                  %359 = vst [vmem:[%s285 + $0x90] sm:$0xf] %v358
                  %v360 = vld [vmem:[%s284 + $0x214] sm:$0xf]
                  %361 = vst [vmem:[%s285 + $0x94] sm:$0xf] %v360
                  %v362 = vld [vmem:[%s284 + $0x218] sm:$0xf]
                  %363 = vst [vmem:[%s285 + $0x98] sm:$0xf] %v362
                  %v364 = vld [vmem:[%s284 + $0x21c] sm:$0xf]
                  %365 = vst [vmem:[%s285 + $0x9c] sm:$0xf] %v364
                  %v366 = vld [vmem:[%s284 + $0x220] sm:$0xf]
                  %367 = vst [vmem:[%s285 + $0xa0] sm:$0xf] %v366
                  %v368 = vld [vmem:[%s284 + $0x224] sm:$0xf]
                  %369 = vst [vmem:[%s285 + $0xa4] sm:$0xf] %v368
                  %v370 = vld [vmem:[%s284 + $0x228] sm:$0xf]
                  %371 = vst [vmem:[%s285 + $0xa8] sm:$0xf] %v370
                  %v372 = vld [vmem:[%s284 + $0x22c] sm:$0xf]
                  %373 = vst [vmem:[%s285 + $0xac] sm:$0xf] %v372
                  %v374 = vld [vmem:[%s284 + $0x230] sm:$0xf]
                  %375 = vst [vmem:[%s285 + $0xb0] sm:$0xf] %v374
                  %v376 = vld [vmem:[%s284 + $0x234] sm:$0xf]
                  %377 = vst [vmem:[%s285 + $0xb4] sm:$0xf] %v376
                  %v378 = vld [vmem:[%s284 + $0x238] sm:$0xf]
                  %379 = vst [vmem:[%s285 + $0xb8] sm:$0xf] %v378
                  %v380 = vld [vmem:[%s284 + $0x23c] sm:$0xf]
                  %381 = vst [vmem:[%s285 + $0xbc] sm:$0xf] %v380
                $region59: #{qattention_forward.3} parent=46 // loop_footer
                  %s283 = sadd.s32 1, %s279
                $region60: #{qattention_forward.3} parent=46 // loop_footer_branch
                  %278 = sbr.rel target = $region56
                $region61: #{qattention_forward.3} parent=46 // loop_exit
                  _
              $region47: #{qattention_forward.3} parent=31 // pred_fallthru
                _
            $region32: #{qattention_forward.3} parent=27 // pred_fallthru
              _
            // Predicated region
            $region33: #{qattention_forward.3} parent=27 // pred_check
              _
            $region34: #{qattention_forward.3} parent=27 // pred_check_branch
              %161 = sbr.rel (0) target = $region36
            $region35: #{qattention_forward.3} parent=27 // pred_region
              loop: start=0, step=1, limit=1
              $region37: #{qattention_forward.3} parent=35 // loop_pre_header
                _
              $region38: #{qattention_forward.3} parent=35 // loop_header
                %s164 = sphi 0, %s168
                %p165 = scmp.ge.s32.totalorder %s164, 1
                %s169 = sphi %s155, %s155
                %s170 = sphi %s150, %s150
              $region39: #{qattention_forward.3} parent=35 // loop_header_branch
                %167 = sbr.rel (%p165) target = $region43
              $region40: #{qattention_forward.3} parent=35 // loop_body
                %v171 = vld [vmem:[%s169] sm:$0xf]
                %172 = vst [vmem:[%s170] sm:$0xf] %v171
                %v173 = vld [vmem:[%s169 + $0x4] sm:$0xf]
                %174 = vst [vmem:[%s170 + $0x4] sm:$0xf] %v173
                %v175 = vld [vmem:[%s169 + $0x8] sm:$0xf]
                %176 = vst [vmem:[%s170 + $0x8] sm:$0xf] %v175
                %v177 = vld [vmem:[%s169 + $0xc] sm:$0xf]
                %178 = vst [vmem:[%s170 + $0xc] sm:$0xf] %v177
                %v179 = vld [vmem:[%s169 + $0x10] sm:$0xf]
                %180 = vst [vmem:[%s170 + $0x10] sm:$0xf] %v179
                %v181 = vld [vmem:[%s169 + $0x14] sm:$0xf]
                %182 = vst [vmem:[%s170 + $0x14] sm:$0xf] %v181
                %v183 = vld [vmem:[%s169 + $0x18] sm:$0xf]
                %184 = vst [vmem:[%s170 + $0x18] sm:$0xf] %v183
                %v185 = vld [vmem:[%s169 + $0x1c] sm:$0xf]
                %186 = vst [vmem:[%s170 + $0x1c] sm:$0xf] %v185
                %v187 = vld [vmem:[%s169 + $0x20] sm:$0xf]
                %188 = vst [vmem:[%s170 + $0x20] sm:$0xf] %v187
                %v189 = vld [vmem:[%s169 + $0x24] sm:$0xf]
                %190 = vst [vmem:[%s170 + $0x24] sm:$0xf] %v189
                %v191 = vld [vmem:[%s169 + $0x28] sm:$0xf]
                %192 = vst [vmem:[%s170 + $0x28] sm:$0xf] %v191
                %v193 = vld [vmem:[%s169 + $0x2c] sm:$0xf]
                %194 = vst [vmem:[%s170 + $0x2c] sm:$0xf] %v193
                %v195 = vld [vmem:[%s169 + $0x30] sm:$0xf]
                %196 = vst [vmem:[%s170 + $0x30] sm:$0xf] %v195
                %v197 = vld [vmem:[%s169 + $0x34] sm:$0xf]
                %198 = vst [vmem:[%s170 + $0x34] sm:$0xf] %v197
                %v199 = vld [vmem:[%s169 + $0x38] sm:$0xf]
                %200 = vst [vmem:[%s170 + $0x38] sm:$0xf] %v199
                %v201 = vld [vmem:[%s169 + $0x3c] sm:$0xf]
                %202 = vst [vmem:[%s170 + $0x3c] sm:$0xf] %v201
                %v203 = vld [vmem:[%s169 + $0x100] sm:$0xf]
                %204 = vst [vmem:[%s170 + $0x40] sm:$0xf] %v203
                %v205 = vld [vmem:[%s169 + $0x104] sm:$0xf]
                %206 = vst [vmem:[%s170 + $0x44] sm:$0xf] %v205
                %v207 = vld [vmem:[%s169 + $0x108] sm:$0xf]
                %208 = vst [vmem:[%s170 + $0x48] sm:$0xf] %v207
                %v209 = vld [vmem:[%s169 + $0x10c] sm:$0xf]
                %210 = vst [vmem:[%s170 + $0x4c] sm:$0xf] %v209
                %v211 = vld [vmem:[%s169 + $0x110] sm:$0xf]
                %212 = vst [vmem:[%s170 + $0x50] sm:$0xf] %v211
                %v213 = vld [vmem:[%s169 + $0x114] sm:$0xf]
                %214 = vst [vmem:[%s170 + $0x54] sm:$0xf] %v213
                %v215 = vld [vmem:[%s169 + $0x118] sm:$0xf]
                %216 = vst [vmem:[%s170 + $0x58] sm:$0xf] %v215
                %v217 = vld [vmem:[%s169 + $0x11c] sm:$0xf]
                %218 = vst [vmem:[%s170 + $0x5c] sm:$0xf] %v217
                %v219 = vld [vmem:[%s169 + $0x120] sm:$0xf]
                %220 = vst [vmem:[%s170 + $0x60] sm:$0xf] %v219
                %v221 = vld [vmem:[%s169 + $0x124] sm:$0xf]
                %222 = vst [vmem:[%s170 + $0x64] sm:$0xf] %v221
                %v223 = vld [vmem:[%s169 + $0x128] sm:$0xf]
                %224 = vst [vmem:[%s170 + $0x68] sm:$0xf] %v223
                %v225 = vld [vmem:[%s169 + $0x12c] sm:$0xf]
                %226 = vst [vmem:[%s170 + $0x6c] sm:$0xf] %v225
                %v227 = vld [vmem:[%s169 + $0x130] sm:$0xf]
                %228 = vst [vmem:[%s170 + $0x70] sm:$0xf] %v227
                %v229 = vld [vmem:[%s169 + $0x134] sm:$0xf]
                %230 = vst [vmem:[%s170 + $0x74] sm:$0xf] %v229
                %v231 = vld [vmem:[%s169 + $0x138] sm:$0xf]
                %232 = vst [vmem:[%s170 + $0x78] sm:$0xf] %v231
                %v233 = vld [vmem:[%s169 + $0x13c] sm:$0xf]
                %234 = vst [vmem:[%s170 + $0x7c] sm:$0xf] %v233
                %v235 = vld [vmem:[%s169 + $0x200] sm:$0xf]
                %236 = vst [vmem:[%s170 + $0x80] sm:$0xf] %v235
                %v237 = vld [vmem:[%s169 + $0x204] sm:$0xf]
                %238 = vst [vmem:[%s170 + $0x84] sm:$0xf] %v237
                %v239 = vld [vmem:[%s169 + $0x208] sm:$0xf]
                %240 = vst [vmem:[%s170 + $0x88] sm:$0xf] %v239
                %v241 = vld [vmem:[%s169 + $0x20c] sm:$0xf]
                %242 = vst [vmem:[%s170 + $0x8c] sm:$0xf] %v241
                %v243 = vld [vmem:[%s169 + $0x210] sm:$0xf]
                %244 = vst [vmem:[%s170 + $0x90] sm:$0xf] %v243
                %v245 = vld [vmem:[%s169 + $0x214] sm:$0xf]
                %246 = vst [vmem:[%s170 + $0x94] sm:$0xf] %v245
                %v247 = vld [vmem:[%s169 + $0x218] sm:$0xf]
                %248 = vst [vmem:[%s170 + $0x98] sm:$0xf] %v247
                %v249 = vld [vmem:[%s169 + $0x21c] sm:$0xf]
                %250 = vst [vmem:[%s170 + $0x9c] sm:$0xf] %v249
                %v251 = vld [vmem:[%s169 + $0x220] sm:$0xf]
                %252 = vst [vmem:[%s170 + $0xa0] sm:$0xf] %v251
                %v253 = vld [vmem:[%s169 + $0x224] sm:$0xf]
                %254 = vst [vmem:[%s170 + $0xa4] sm:$0xf] %v253
                %v255 = vld [vmem:[%s169 + $0x228] sm:$0xf]
                %256 = vst [vmem:[%s170 + $0xa8] sm:$0xf] %v255
                %v257 = vld [vmem:[%s169 + $0x22c] sm:$0xf]
                %258 = vst [vmem:[%s170 + $0xac] sm:$0xf] %v257
                %v259 = vld [vmem:[%s169 + $0x230] sm:$0xf]
                %260 = vst [vmem:[%s170 + $0xb0] sm:$0xf] %v259
                %v261 = vld [vmem:[%s169 + $0x234] sm:$0xf]
                %262 = vst [vmem:[%s170 + $0xb4] sm:$0xf] %v261
                %v263 = vld [vmem:[%s169 + $0x238] sm:$0xf]
                %264 = vst [vmem:[%s170 + $0xb8] sm:$0xf] %v263
                %v265 = vld [vmem:[%s169 + $0x23c] sm:$0xf]
                %266 = vst [vmem:[%s170 + $0xbc] sm:$0xf] %v265
              $region41: #{qattention_forward.3} parent=35 // loop_footer
                %s168 = sadd.s32 1, %s164
              $region42: #{qattention_forward.3} parent=35 // loop_footer_branch
                %163 = sbr.rel target = $region38
              $region43: #{qattention_forward.3} parent=35 // loop_exit
                _
            $region36: #{qattention_forward.3} parent=27 // pred_fallthru
              _
          $region28: #{qattention_forward.3} parent=23 // pred_fallthru
            _
          %382 = vnop
        $region24: #{qattention_forward.3} parent=19 // pred_fallthru
          _
        // Predicated region
        $region62: #{qattention_forward.3} parent=19 // pred_check
          %p383 = pneg %p69
        $region63: #{qattention_forward.3} parent=19 // pred_check_branch
          %385 = sbr.rel (%p383) target = $region65
        $region64: #{qattention_forward.3} parent=19 // pred_region
          %p386 = scmp.lt.s32.totalorder %s17, 3
          %s387 = scalar_select %p386, %s17, 3
          %s388 = smul.addr %s387, 4
          %s389 = scalar_lea.vmem %s1, %s388
        $region65: #{qattention_forward.3} parent=19 // pred_fallthru
          _
      $region20: #{qattention_forward.3} parent=5 // pred_fallthru
        _
      %p390 = scmp.le.s32.totalorder 1, %s9
      %p391 = scmp.lt.s32.totalorder %s9, 9
      %p392 = pnand %p390, %p391
      %p393 = pneg %p392
      // Predicated region
      $region66: #{qattention_forward.3} parent=5 // pred_check
        _
      $region67: #{qattention_forward.3} parent=5 // pred_check_branch
        %395 = sbr.rel (%p392) target = $region69
      $region68: #{qattention_forward.3} parent=5 // pred_region
        %s396 = ssub.s32 %s9, 1
        %s397 = sand.u32 %s36, 1
        %s398 = sand.u32 %s36, 1
        %s399 = smul.addr %s398, 192
        %s400 = scalar_lea.vmem [#allocation3], %s399
        // Predicated region
        $region70: #{qattention_forward.3} parent=68 // pred_check
          %p401 = pneg %p49
        $region71: #{qattention_forward.3} parent=68 // pred_check_branch
          %403 = sbr.rel (%p401) target = $region73
        $region72: #{qattention_forward.3} parent=68 // pred_region
          _
        $region73: #{qattention_forward.3} parent=68 // pred_fallthru
          _
        %s404 = sand.u32 %s36, 1
        %s405 = sand.u32 %s36, 1
        %s406 = smul.addr %s405, 192
        %s407 = scalar_lea.vmem [#allocation3], %s406
        %p408 = pneg %p49
        %p409 = pneg %p46
        %p410 = scmp.lt.s32.totalorder %s19, 3
        %s411 = scalar_select %p410, %s19, 3
        %s412 = smul.addr %s411, 4
        %s413 = scalar_lea.vmem %s1, %s412
        %p414 = pneg %p75
        %p415 = pneg %p72
        %p416 = pneg %p96
        %p417 = pneg %p93
        %p418 = pneg %p122
        %p419 = pneg %p119
        %p420 = scmp.lt.s32.totalorder %s18, 1
        %s421 = scalar_select %p420, %s18, 1
        %s422 = smul.addr %s421, 16
        %s423 = smul.addr %s422, 8
        %s424 = scalar_lea.vmem %s3, %s423
        %p425 = scmp.lt.s32.totalorder %s19, 3
        %s426 = scalar_select %p425, %s19, 3
        %s427 = smul.addr %s426, 4
        %s428 = scalar_lea.vmem %s1, %s427
        %p429 = scmp.lt.s32.totalorder %s18, 1
        %s430 = scalar_select %p429, %s18, 1
        %s431 = smul.addr %s430, 16
        %s432 = smul.addr %s431, 8
        %s433 = scalar_lea.vmem %s3, %s432
        %p436 = scmp.eq.s32.totalorder %s19, 0
        // Predicated region
        $region74: #{qattention_forward.3} parent=68 // pred_check
          %p437 = pneg %p436
        $region75: #{qattention_forward.3} parent=68 // pred_check_branch
          %439 = sbr.rel (%p437) target = $region77
        $region76: #{qattention_forward.3} parent=68 // pred_region
          %vm440 = vcmask 261120
          %441 = vst.msk [vmem:[#allocation2] sm:$0xff] %vm440, 0.0
          %442 = vst.msk [vmem:[#allocation2 + $0x8] sm:$0xff] %vm440, 0.0
          %443 = vst.msk [vmem:[#allocation2 + $0x10] sm:$0xff] %vm440, 0.0
          %444 = vst.msk [vmem:[#allocation2 + $0x18] sm:$0xff] %vm440, 0.0
          %445 = vst.msk [vmem:[#allocation2 + $0x20] sm:$0xff] %vm440, 0.0
          %446 = vst.msk [vmem:[#allocation2 + $0x28] sm:$0xff] %vm440, 0.0
          %447 = vst.msk [vmem:[#allocation2 + $0x30] sm:$0xff] %vm440, 0.0
          %448 = vst.msk [vmem:[#allocation2 + $0x38] sm:$0xff] %vm440, 0.0
          %449 = vst.msk [vmem:[#allocation2 + $0x40] sm:$0xff] %vm440, 0.0
          %450 = vst.msk [vmem:[#allocation2 + $0x48] sm:$0xff] %vm440, 0.0
          %451 = vst.msk [vmem:[#allocation2 + $0x50] sm:$0xff] %vm440, 0.0
          %452 = vst.msk [vmem:[#allocation2 + $0x58] sm:$0xff] %vm440, 0.0
          %453 = vst.msk [vmem:[#allocation2 + $0x60] sm:$0xff] %vm440, 0.0
          %454 = vst.msk [vmem:[#allocation2 + $0x68] sm:$0xff] %vm440, 0.0
          %455 = vst.msk [vmem:[#allocation2 + $0x70] sm:$0xff] %vm440, 0.0
          %456 = vst.msk [vmem:[#allocation2 + $0x78] sm:$0xff] %vm440, 0.0
        $region77: #{qattention_forward.3} parent=68 // pred_fallthru
          _
        %v457 = vld [vmem:[%s400] sm:$0xf]
        %v458 = vld [vmem:[%s400 + $0x4] sm:$0xf]
        %v459 = vld [vmem:[%s400 + $0x8] sm:$0xf]
        %v460 = vld [vmem:[%s400 + $0xc] sm:$0xf]
        %v461 = vld [vmem:[%s400 + $0x10] sm:$0xf]
        %v462 = vld [vmem:[%s400 + $0x14] sm:$0xf]
        %v463 = vld [vmem:[%s400 + $0x18] sm:$0xf]
        %v464 = vld [vmem:[%s400 + $0x1c] sm:$0xf]
        %v465 = vld [vmem:[%s400 + $0x20] sm:$0xf]
        %v466 = vld [vmem:[%s400 + $0x24] sm:$0xf]
        %v467 = vld [vmem:[%s400 + $0x28] sm:$0xf]
        %v468 = vld [vmem:[%s400 + $0x2c] sm:$0xf]
        %v469 = vld [vmem:[%s400 + $0x30] sm:$0xf]
        %v470 = vld [vmem:[%s400 + $0x34] sm:$0xf]
        %v471 = vld [vmem:[%s400 + $0x38] sm:$0xf]
        %v472 = vld [vmem:[%s400 + $0x3c] sm:$0xf]
        %v473 = vmul.bf16 %v457, 1052065461
        %v474 = vmul.bf16 %v458, 1052065461
        %v475 = vmul.bf16 %v459, 1052065461
        %v476 = vmul.bf16 %v460, 1052065461
        %v477 = vmul.bf16 %v461, 1052065461
        %v478 = vmul.bf16 %v462, 1052065461
        %v479 = vmul.bf16 %v463, 1052065461
        %v480 = vmul.bf16 %v464, 1052065461
        %v481 = vmul.bf16 %v465, 1052065461
        %v482 = vmul.bf16 %v466, 1052065461
        %v483 = vmul.bf16 %v467, 1052065461
        %v484 = vmul.bf16 %v468, 1052065461
        %v485 = vmul.bf16 %v469, 1052065461
        %v486 = vmul.bf16 %v470, 1052065461
        %v487 = vmul.bf16 %v471, 1052065461
        %v488 = vmul.bf16 %v472, 1052065461
        %s489 = scalar_lea.vmem %s400, 64 [#allocation3]
        %v490 = vld [vmem:[%s489] sm:$0xf]
        %v491 = vld [vmem:[%s489 + $0x4] sm:$0xf]
        %v492 = vld [vmem:[%s489 + $0x8] sm:$0xf]
        %v493 = vld [vmem:[%s489 + $0xc] sm:$0xf]
        %v494 = vld [vmem:[%s489 + $0x10] sm:$0xf]
        %v495 = vld [vmem:[%s489 + $0x14] sm:$0xf]
        %v496 = vld [vmem:[%s489 + $0x18] sm:$0xf]
        %v497 = vld [vmem:[%s489 + $0x1c] sm:$0xf]
        %v498 = vld [vmem:[%s489 + $0x20] sm:$0xf]
        %v499 = vld [vmem:[%s489 + $0x24] sm:$0xf]
        %v500 = vld [vmem:[%s489 + $0x28] sm:$0xf]
        %v501 = vld [vmem:[%s489 + $0x2c] sm:$0xf]
        %v502 = vld [vmem:[%s489 + $0x30] sm:$0xf]
        %v503 = vld [vmem:[%s489 + $0x34] sm:$0xf]
        %v504 = vld [vmem:[%s489 + $0x38] sm:$0xf]
        %v505 = vld [vmem:[%s489 + $0x3c] sm:$0xf]
        %s506 = scalar_lea.vmem %s400, 128 [#allocation3]
        %v507 = vld [vmem:[%s506] sm:$0xf]
        %v508 = vld [vmem:[%s506 + $0x4] sm:$0xf]
        %v509 = vld [vmem:[%s506 + $0x8] sm:$0xf]
        %v510 = vld [vmem:[%s506 + $0xc] sm:$0xf]
        %v511 = vld [vmem:[%s506 + $0x10] sm:$0xf]
        %v512 = vld [vmem:[%s506 + $0x14] sm:$0xf]
        %v513 = vld [vmem:[%s506 + $0x18] sm:$0xf]
        %v514 = vld [vmem:[%s506 + $0x1c] sm:$0xf]
        %v515 = vld [vmem:[%s506 + $0x20] sm:$0xf]
        %v516 = vld [vmem:[%s506 + $0x24] sm:$0xf]
        %v517 = vld [vmem:[%s506 + $0x28] sm:$0xf]
        %v518 = vld [vmem:[%s506 + $0x2c] sm:$0xf]
        %v519 = vld [vmem:[%s506 + $0x30] sm:$0xf]
        %v520 = vld [vmem:[%s506 + $0x34] sm:$0xf]
        %v521 = vld [vmem:[%s506 + $0x38] sm:$0xf]
        %v522 = vld [vmem:[%s506 + $0x3c] sm:$0xf]
        %v539 = vunpack.c.l.b16 %v473
        %v540 = vunpack.c.l.b16 %v474
        %v541 = vunpack.c.l.b16 %v475
        %v542 = vunpack.c.l.b16 %v476
        %v543 = vunpack.c.l.b16 %v477
        %v544 = vunpack.c.l.b16 %v478
        %v545 = vunpack.c.l.b16 %v479
        %v546 = vunpack.c.l.b16 %v480
        %v547 = vunpack.c.l.b16 %v481
        %v548 = vunpack.c.l.b16 %v482
        %v549 = vunpack.c.l.b16 %v483
        %v550 = vunpack.c.l.b16 %v484
        %v551 = vunpack.c.l.b16 %v485
        %v552 = vunpack.c.l.b16 %v486
        %v553 = vunpack.c.l.b16 %v487
        %v554 = vunpack.c.l.b16 %v488
        %v555 = vpack.c.b16 %v540, %v539
        %v556 = vpack.c.b16 %v542, %v541
        %v557 = vpack.c.b16 %v544, %v543
        %v558 = vpack.c.b16 %v546, %v545
        %v559 = vpack.c.b16 %v548, %v547
        %v560 = vpack.c.b16 %v550, %v549
        %v561 = vpack.c.b16 %v552, %v551
        %v562 = vpack.c.b16 %v554, %v553
        %v579 = vunpack.c.l.b16 %v490
        %v580 = vunpack.c.l.b16 %v491
        %v581 = vunpack.c.l.b16 %v492
        %v582 = vunpack.c.l.b16 %v493
        %v583 = vunpack.c.l.b16 %v494
        %v584 = vunpack.c.l.b16 %v495
        %v585 = vunpack.c.l.b16 %v496
        %v586 = vunpack.c.l.b16 %v497
        %v587 = vunpack.c.l.b16 %v498
        %v588 = vunpack.c.l.b16 %v499
        %v589 = vunpack.c.l.b16 %v500
        %v590 = vunpack.c.l.b16 %v501
        %v591 = vunpack.c.l.b16 %v502
        %v592 = vunpack.c.l.b16 %v503
        %v593 = vunpack.c.l.b16 %v504
        %v594 = vunpack.c.l.b16 %v505
        %v595 = vpack.c.b16 %v580, %v579
        %v596 = vpack.c.b16 %v582, %v581
        %v597 = vpack.c.b16 %v584, %v583
        %v598 = vpack.c.b16 %v586, %v585
        %v599 = vpack.c.b16 %v588, %v587
        %v600 = vpack.c.b16 %v590, %v589
        %v601 = vpack.c.b16 %v592, %v591
        %v602 = vpack.c.b16 %v594, %v593
        %vm603 = vcmask 64512
        %v605 = vsel %vm603, %v555, 0
        %v608 = vsel %vm603, %v556, 0
        %v611 = vsel %vm603, %v557, 0
        %v614 = vsel %vm603, %v558, 0
        %v617 = vsel %vm603, %v559, 0
        %v620 = vsel %vm603, %v560, 0
        %v623 = vsel %vm603, %v561, 0
        %v626 = vsel %vm603, %v562, 0
        %v629 = vsel %vm603, %v595, 0
        %v632 = vsel %vm603, %v596, 0
        %v635 = vsel %vm603, %v597, 0
        %v638 = vsel %vm603, %v598, 0
        %v641 = vsel %vm603, %v599, 0
        %v644 = vsel %vm603, %v600, 0
        %v647 = vsel %vm603, %v601, 0
        %v650 = vsel %vm603, %v602, 0
        %652 = vmatprep.subr.bf16.mxu0 0
        %653 = vmatpush1.bf16.xpose.msra.mxu0 %v629
        %654 = vmatprep.subr.bf16.mxu0 0
        %655 = vmatpush1.bf16.xpose.msra.mxu0 %v632
        %656 = vmatprep.subr.bf16.mxu0 0
        %657 = vmatpush1.bf16.xpose.msra.mxu0 %v635
        %658 = vmatprep.subr.bf16.mxu0 0
        %659 = vmatpush1.bf16.xpose.msra.mxu0 %v638
        %660 = vmatprep.subr.bf16.mxu0 0
        %661 = vmatpush1.bf16.xpose.msra.mxu0 %v641
        %662 = vmatprep.subr.bf16.mxu0 0
        %663 = vmatpush1.bf16.xpose.msra.mxu0 %v644
        %664 = vmatprep.subr.bf16.mxu0 0
        %665 = vmatpush1.bf16.xpose.msra.mxu0 %v647
        %666 = vmatprep.subr.bf16.mxu0 0
        %667 = vmatpush1.bf16.xpose.msra.mxu0 %v650
        %668 = vmatprep.subr.bf16.mxu0 0
        %669 = vmatpush1.bf16.xpose.msra.mxu0 0
        %670 = vmatprep.subr.bf16.mxu0 0
        %671 = vmatpush1.bf16.xpose.msra.mxu0 0
        %672 = vmatprep.subr.bf16.mxu0 0
        %673 = vmatpush1.bf16.xpose.msra.mxu0 0
        %674 = vmatprep.subr.bf16.mxu0 0
        %675 = vmatpush1.bf16.xpose.msra.mxu0 0
        %676 = vmatprep.subr.bf16.mxu0 0
        %677 = vmatpush1.bf16.xpose.msra.mxu0 0
        %678 = vmatprep.subr.bf16.mxu0 0
        %679 = vmatpush1.bf16.xpose.msra.mxu0 0
        %680 = vmatprep.subr.bf16.mxu0 0
        %681 = vmatpush1.bf16.xpose.msra.mxu0 0
        %682 = vmatprep.subr.bf16.mxu0 0
        %683 = vmatpush1.bf16.xpose.msra.mxu0 0
        %684 = vmatprep.mubr.bf16.mxu0 0
        %685 = vmatmul.mubr.bf16.gmra.mrb[0].mxu0 %v605
        %v686 = vpop.f32.mrb[0].mxu0
        %v687 = vadd.f32 0.0, %v686
        %v688 = vpop.f32.mrb[0].mxu0
        %v689 = vpop.f32.mrb[0].mxu0
        %v690 = vadd.f32 0.0, %v689
        %v691 = vpop.f32.mrb[0].mxu0
        %692 = vmatprep.mubr.bf16.mxu0 0
        %693 = vmatmul.mubr.bf16.gmra.mrb[0].mxu0 %v608
        %v694 = vpop.f32.mrb[0].mxu0
        %v695 = vadd.f32 0.0, %v694
        %v696 = vpop.f32.mrb[0].mxu0
        %v697 = vpop.f32.mrb[0].mxu0
        %v698 = vadd.f32 0.0, %v697
        %v699 = vpop.f32.mrb[0].mxu0
        %700 = vmatprep.mubr.bf16.mxu0 0
        %701 = vmatmul.mubr.bf16.gmra.mrb[0].mxu0 %v611
        %v702 = vpop.f32.mrb[0].mxu0
        %v703 = vadd.f32 0.0, %v702
        %v704 = vpop.f32.mrb[0].mxu0
        %v705 = vpop.f32.mrb[0].mxu0
        %v706 = vadd.f32 0.0, %v705
        %v707 = vpop.f32.mrb[0].mxu0
        %708 = vmatprep.mubr.bf16.mxu0 0
        %709 = vmatmul.mubr.bf16.gmra.mrb[0].mxu0 %v614
        %v710 = vpop.f32.mrb[0].mxu0
        %v711 = vadd.f32 0.0, %v710
        %v712 = vpop.f32.mrb[0].mxu0
        %v713 = vpop.f32.mrb[0].mxu0
        %v714 = vadd.f32 0.0, %v713
        %v715 = vpop.f32.mrb[0].mxu0
        %716 = vmatprep.mubr.bf16.mxu0 0
        %717 = vmatmul.mubr.bf16.gmra.mrb[0].mxu0 %v617
        %v718 = vpop.f32.mrb[0].mxu0
        %v719 = vadd.f32 0.0, %v718
        %v720 = vpop.f32.mrb[0].mxu0
        %v721 = vpop.f32.mrb[0].mxu0
        %v722 = vadd.f32 0.0, %v721
        %v723 = vpop.f32.mrb[0].mxu0
        %724 = vmatprep.mubr.bf16.mxu0 0
        %725 = vmatmul.mubr.bf16.gmra.mrb[0].mxu0 %v620
        %v726 = vpop.f32.mrb[0].mxu0
        %v727 = vadd.f32 0.0, %v726
        %v728 = vpop.f32.mrb[0].mxu0
        %v729 = vpop.f32.mrb[0].mxu0
        %v730 = vadd.f32 0.0, %v729
        %v731 = vpop.f32.mrb[0].mxu0
        %732 = vmatprep.mubr.bf16.mxu0 0
        %733 = vmatmul.mubr.bf16.gmra.mrb[0].mxu0 %v623
        %v734 = vpop.f32.mrb[0].mxu0
        %v735 = vadd.f32 0.0, %v734
        %v736 = vpop.f32.mrb[0].mxu0
        %v737 = vpop.f32.mrb[0].mxu0
        %v738 = vadd.f32 0.0, %v737
        %v739 = vpop.f32.mrb[0].mxu0
        %740 = vmatprep.mubr.bf16.mxu0 0
        %741 = vmatmul.mubr.bf16.gmra.mrb[0].mxu0 %v626
        %v742 = vpop.f32.mrb[0].mxu0
        %v743 = vadd.f32 0.0, %v742
        %v744 = vpop.f32.mrb[0].mxu0
        %v745 = vpop.f32.mrb[0].mxu0
        %v746 = vadd.f32 0.0, %v745
        %v747 = vpop.f32.mrb[0].mxu0
        %748 = vdwg.mxu0
        %v749 = vlaneseq
        %v750 = vand.u32 %v749, 127
        %vm751 = vcmp.lt.s32.totalorder %v750, 8
        %v752 = vsel %vm751, %v687, -1e+30
        %v753 = vsel %vm751, %v690, -1e+30
        %v754 = vsel %vm751, %v695, -1e+30
        %v755 = vsel %vm751, %v698, -1e+30
        %v756 = vsel %vm751, %v703, -1e+30
        %v757 = vsel %vm751, %v706, -1e+30
        %v758 = vsel %vm751, %v711, -1e+30
        %v759 = vsel %vm751, %v714, -1e+30
        %v760 = vsel %vm751, %v719, -1e+30
        %v761 = vsel %vm751, %v722, -1e+30
        %v762 = vsel %vm751, %v727, -1e+30
        %v763 = vsel %vm751, %v730, -1e+30
        %v764 = vsel %vm751, %v735, -1e+30
        %v765 = vsel %vm751, %v738, -1e+30
        %v766 = vsel %vm751, %v743, -1e+30
        %v767 = vsel %vm751, %v746, -1e+30
        %768 = vmax.xlane.f32.xlu0 %v752
        %v769 = vpop.xlane.xlu0 %768
        %770 = vmax.xlane.f32.xlu0 %v753
        %v771 = vpop.xlane.xlu0 %770
        %772 = vmax.xlane.f32.xlu0 %v754
        %v773 = vpop.xlane.xlu0 %772
        %774 = vmax.xlane.f32.xlu0 %v755
        %v775 = vpop.xlane.xlu0 %774
        %776 = vmax.xlane.f32.xlu0 %v756
        %v777 = vpop.xlane.xlu0 %776
        %778 = vmax.xlane.f32.xlu0 %v757
        %v779 = vpop.xlane.xlu0 %778
        %780 = vmax.xlane.f32.xlu0 %v758
        %v781 = vpop.xlane.xlu0 %780
        %782 = vmax.xlane.f32.xlu0 %v759
        %v783 = vpop.xlane.xlu0 %782
        %784 = vmax.xlane.f32.xlu0 %v760
        %v785 = vpop.xlane.xlu0 %784
        %786 = vmax.xlane.f32.xlu0 %v761
        %v787 = vpop.xlane.xlu0 %786
        %788 = vmax.xlane.f32.xlu0 %v762
        %v789 = vpop.xlane.xlu0 %788
        %790 = vmax.xlane.f32.xlu0 %v763
        %v791 = vpop.xlane.xlu0 %790
        %792 = vmax.xlane.f32.xlu0 %v764
        %v793 = vpop.xlane.xlu0 %792
        %794 = vmax.xlane.f32.xlu0 %v765
        %v795 = vpop.xlane.xlu0 %794
        %796 = vmax.xlane.f32.xlu0 %v766
        %v797 = vpop.xlane.xlu0 %796
        %798 = vmax.xlane.f32.xlu0 %v767
        %v799 = vpop.xlane.xlu0 %798
        %v800 = vsub.f32 %v752, %v769
        %v801 = vsub.f32 %v753, %v771
        %v802 = vsub.f32 %v754, %v773
        %v803 = vsub.f32 %v755, %v775
        %v804 = vsub.f32 %v756, %v777
        %v805 = vsub.f32 %v757, %v779
        %v806 = vsub.f32 %v758, %v781
        %v807 = vsub.f32 %v759, %v783
        %v808 = vsub.f32 %v760, %v785
        %v809 = vsub.f32 %v761, %v787
        %v810 = vsub.f32 %v762, %v789
        %v811 = vsub.f32 %v763, %v791
        %v812 = vsub.f32 %v764, %v793
        %v813 = vsub.f32 %v765, %v795
        %v814 = vsub.f32 %v766, %v797
        %v815 = vsub.f32 %v767, %v799
        %v816 = vmul.f32 %v800, 1.442695
        %v817 = vpow.pop %v816
        %v818 = vmul.f32 %v801, 1.442695
        %v819 = vpow.pop %v818
        %v820 = vmul.f32 %v802, 1.442695
        %v821 = vpow.pop %v820
        %v822 = vmul.f32 %v803, 1.442695
        %v823 = vpow.pop %v822
        %v824 = vmul.f32 %v804, 1.442695
        %v825 = vpow.pop %v824
        %v826 = vmul.f32 %v805, 1.442695
        %v827 = vpow.pop %v826
        %v828 = vmul.f32 %v806, 1.442695
        %v829 = vpow.pop %v828
        %v830 = vmul.f32 %v807, 1.442695
        %v831 = vpow.pop %v830
        %v832 = vmul.f32 %v808, 1.442695
        %v833 = vpow.pop %v832
        %v834 = vmul.f32 %v809, 1.442695
        %v835 = vpow.pop %v834
        %v836 = vmul.f32 %v810, 1.442695
        %v837 = vpow.pop %v836
        %v838 = vmul.f32 %v811, 1.442695
        %v839 = vpow.pop %v838
        %v840 = vmul.f32 %v812, 1.442695
        %v841 = vpow.pop %v840
        %v842 = vmul.f32 %v813, 1.442695
        %v843 = vpow.pop %v842
        %v844 = vmul.f32 %v814, 1.442695
        %v845 = vpow.pop %v844
        %v846 = vmul.f32 %v815, 1.442695
        %v847 = vpow.pop %v846
        %848 = vadd.xlane.f32.xlu0 %v817
        %v849 = vpop.xlane.xlu0 %848
        %850 = vadd.xlane.f32.xlu0 %v819
        %v851 = vpop.xlane.xlu0 %850
        %852 = vadd.xlane.f32.xlu0 %v821
        %v853 = vpop.xlane.xlu0 %852
        %854 = vadd.xlane.f32.xlu0 %v823
        %v855 = vpop.xlane.xlu0 %854
        %856 = vadd.xlane.f32.xlu0 %v825
        %v857 = vpop.xlane.xlu0 %856
        %858 = vadd.xlane.f32.xlu0 %v827
        %v859 = vpop.xlane.xlu0 %858
        %860 = vadd.xlane.f32.xlu0 %v829
        %v861 = vpop.xlane.xlu0 %860
        %862 = vadd.xlane.f32.xlu0 %v831
        %v863 = vpop.xlane.xlu0 %862
        %864 = vadd.xlane.f32.xlu0 %v833
        %v865 = vpop.xlane.xlu0 %864
        %866 = vadd.xlane.f32.xlu0 %v835
        %v867 = vpop.xlane.xlu0 %866
        %868 = vadd.xlane.f32.xlu0 %v837
        %v869 = vpop.xlane.xlu0 %868
        %870 = vadd.xlane.f32.xlu0 %v839
        %v871 = vpop.xlane.xlu0 %870
        %872 = vadd.xlane.f32.xlu0 %v841
        %v873 = vpop.xlane.xlu0 %872
        %874 = vadd.xlane.f32.xlu0 %v843
        %v875 = vpop.xlane.xlu0 %874
        %876 = vadd.xlane.f32.xlu0 %v845
        %v877 = vpop.xlane.xlu0 %876
        %878 = vadd.xlane.f32.xlu0 %v847
        %v879 = vpop.xlane.xlu0 %878
        %v880 = vrcp.pop %v849
        %v881 = vrcp.pop %v851
        %v882 = vrcp.pop %v853
        %v883 = vrcp.pop %v855
        %v884 = vrcp.pop %v857
        %v885 = vrcp.pop %v859
        %v886 = vrcp.pop %v861
        %v887 = vrcp.pop %v863
        %v888 = vrcp.pop %v865
        %v889 = vrcp.pop %v867
        %v890 = vrcp.pop %v869
        %v891 = vrcp.pop %v871
        %v892 = vrcp.pop %v873
        %v893 = vrcp.pop %v875
        %v894 = vrcp.pop %v877
        %v895 = vrcp.pop %v879
        %v896 = vmul.f32 %v817, %v880
        %v897 = vmul.f32 %v819, %v881
        %v898 = vmul.f32 %v821, %v882
        %v899 = vmul.f32 %v823, %v883
        %v900 = vmul.f32 %v825, %v884
        %v901 = vmul.f32 %v827, %v885
        %v902 = vmul.f32 %v829, %v886
        %v903 = vmul.f32 %v831, %v887
        %v904 = vmul.f32 %v833, %v888
        %v905 = vmul.f32 %v835, %v889
        %v906 = vmul.f32 %v837, %v890
        %v907 = vmul.f32 %v839, %v891
        %v908 = vmul.f32 %v841, %v892
        %v909 = vmul.f32 %v843, %v893
        %v910 = vmul.f32 %v845, %v894
        %v911 = vmul.f32 %v847, %v895
        %v912 = vpack.c.bf16 %v897, %v896
        %v913 = vpack.c.bf16 %v899, %v898
        %v914 = vpack.c.bf16 %v901, %v900
        %v915 = vpack.c.bf16 %v903, %v902
        %v916 = vpack.c.bf16 %v905, %v904
        %v917 = vpack.c.bf16 %v907, %v906
        %v918 = vpack.c.bf16 %v909, %v908
        %v919 = vpack.c.bf16 %v911, %v910
        %v936 = vunpack.c.l.b16 %v507
        %v937 = vunpack.c.l.b16 %v508
        %v938 = vunpack.c.l.b16 %v509
        %v939 = vunpack.c.l.b16 %v510
        %v940 = vunpack.c.l.b16 %v511
        %v941 = vunpack.c.l.b16 %v512
        %v942 = vunpack.c.l.b16 %v513
        %v943 = vunpack.c.l.b16 %v514
        %v944 = vunpack.c.l.b16 %v515
        %v945 = vunpack.c.l.b16 %v516
        %v946 = vunpack.c.l.b16 %v517
        %v947 = vunpack.c.l.b16 %v518
        %v948 = vunpack.c.l.b16 %v519
        %v949 = vunpack.c.l.b16 %v520
        %v950 = vunpack.c.l.b16 %v521
        %v951 = vunpack.c.l.b16 %v522
        %v952 = vpack.c.b16 %v937, %v936
        %v953 = vpack.c.b16 %v939, %v938
        %v954 = vpack.c.b16 %v941, %v940
        %v955 = vpack.c.b16 %v943, %v942
        %v956 = vpack.c.b16 %v945, %v944
        %v957 = vpack.c.b16 %v947, %v946
        %v958 = vpack.c.b16 %v949, %v948
        %v959 = vpack.c.b16 %v951, %v950
        %968 = vmatprep.subr.bf16.mxu0 0
        %969 = vmatpush1.bf16.msra.mxu0 %v952
        %970 = vmatprep.subr.bf16.mxu0 0
        %971 = vmatpush1.bf16.msra.mxu0 %v953
        %972 = vmatprep.subr.bf16.mxu0 0
        %973 = vmatpush1.bf16.msra.mxu0 %v954
        %974 = vmatprep.subr.bf16.mxu0 0
        %975 = vmatpush1.bf16.msra.mxu0 %v955
        %976 = vmatprep.subr.bf16.mxu0 0
        %977 = vmatpush1.bf16.msra.mxu0 %v956
        %978 = vmatprep.subr.bf16.mxu0 0
        %979 = vmatpush1.bf16.msra.mxu0 %v957
        %980 = vmatprep.subr.bf16.mxu0 0
        %981 = vmatpush1.bf16.msra.mxu0 %v958
        %982 = vmatprep.subr.bf16.mxu0 0
        %983 = vmatpush1.bf16.msra.mxu0 %v959
        %984 = vmatprep.subr.bf16.mxu0 0
        %985 = vmatpush1.bf16.msra.mxu0 0
        %986 = vmatprep.subr.bf16.mxu0 0
        %987 = vmatpush1.bf16.msra.mxu0 0
        %988 = vmatprep.subr.bf16.mxu0 0
        %989 = vmatpush1.bf16.msra.mxu0 0
        %990 = vmatprep.subr.bf16.mxu0 0
        %991 = vmatpush1.bf16.msra.mxu0 0
        %992 = vmatprep.subr.bf16.mxu0 0
        %993 = vmatpush1.bf16.msra.mxu0 0
        %994 = vmatprep.subr.bf16.mxu0 0
        %995 = vmatpush1.bf16.msra.mxu0 0
        %996 = vmatprep.subr.bf16.mxu0 0
        %997 = vmatpush1.bf16.msra.mxu0 0
        %998 = vmatprep.subr.bf16.mxu0 0
        %999 = vmatpush1.bf16.msra.mxu0 0
        %1000 = vmatprep.mubr.bf16.mxu0 0
        %1001 = vmatmul.mubr.bf16.gmra.mrb[0].mxu0 %v912
        %v1002 = vpop.f32.mrb[0].mxu0
        %v1003 = vadd.f32 0.0, %v1002
        %v1004 = vpop.f32.mrb[0].mxu0
        %v1005 = vpop.f32.mrb[0].mxu0
        %v1006 = vadd.f32 0.0, %v1005
        %v1007 = vpop.f32.mrb[0].mxu0
        %1008 = vmatprep.mubr.bf16.mxu0 0
        %1009 = vmatmul.mubr.bf16.gmra.mrb[0].mxu0 %v913
        %v1010 = vpop.f32.mrb[0].mxu0
        %v1011 = vadd.f32 0.0, %v1010
        %v1012 = vpop.f32.mrb[0].mxu0
        %v1013 = vpop.f32.mrb[0].mxu0
        %v1014 = vadd.f32 0.0, %v1013
        %v1015 = vpop.f32.mrb[0].mxu0
        %1016 = vmatprep.mubr.bf16.mxu0 0
        %1017 = vmatmul.mubr.bf16.gmra.mrb[0].mxu0 %v914
        %v1018 = vpop.f32.mrb[0].mxu0
        %v1019 = vadd.f32 0.0, %v1018
        %v1020 = vpop.f32.mrb[0].mxu0
        %v1021 = vpop.f32.mrb[0].mxu0
        %v1022 = vadd.f32 0.0, %v1021
        %v1023 = vpop.f32.mrb[0].mxu0
        %1024 = vmatprep.mubr.bf16.mxu0 0
        %1025 = vmatmul.mubr.bf16.gmra.mrb[0].mxu0 %v915
        %v1026 = vpop.f32.mrb[0].mxu0
        %v1027 = vadd.f32 0.0, %v1026
        %v1028 = vpop.f32.mrb[0].mxu0
        %v1029 = vpop.f32.mrb[0].mxu0
        %v1030 = vadd.f32 0.0, %v1029
        %v1031 = vpop.f32.mrb[0].mxu0
        %1032 = vmatprep.mubr.bf16.mxu0 0
        %1033 = vmatmul.mubr.bf16.gmra.mrb[0].mxu0 %v916
        %v1034 = vpop.f32.mrb[0].mxu0
        %v1035 = vadd.f32 0.0, %v1034
        %v1036 = vpop.f32.mrb[0].mxu0
        %v1037 = vpop.f32.mrb[0].mxu0
        %v1038 = vadd.f32 0.0, %v1037
        %v1039 = vpop.f32.mrb[0].mxu0
        %1040 = vmatprep.mubr.bf16.mxu0 0
        %1041 = vmatmul.mubr.bf16.gmra.mrb[0].mxu0 %v917
        %v1042 = vpop.f32.mrb[0].mxu0
        %v1043 = vadd.f32 0.0, %v1042
        %v1044 = vpop.f32.mrb[0].mxu0
        %v1045 = vpop.f32.mrb[0].mxu0
        %v1046 = vadd.f32 0.0, %v1045
        %v1047 = vpop.f32.mrb[0].mxu0
        %1048 = vmatprep.mubr.bf16.mxu0 0
        %1049 = vmatmul.mubr.bf16.gmra.mrb[0].mxu0 %v918
        %v1050 = vpop.f32.mrb[0].mxu0
        %v1051 = vadd.f32 0.0, %v1050
        %v1052 = vpop.f32.mrb[0].mxu0
        %v1053 = vpop.f32.mrb[0].mxu0
        %v1054 = vadd.f32 0.0, %v1053
        %v1055 = vpop.f32.mrb[0].mxu0
        %1056 = vmatprep.mubr.bf16.mxu0 0
        %1057 = vmatmul.mubr.bf16.gmra.mrb[0].mxu0 %v919
        %v1058 = vpop.f32.mrb[0].mxu0
        %v1059 = vadd.f32 0.0, %v1058
        %v1060 = vpop.f32.mrb[0].mxu0
        %v1061 = vpop.f32.mrb[0].mxu0
        %v1062 = vadd.f32 0.0, %v1061
        %v1063 = vpop.f32.mrb[0].mxu0
        %1064 = vdwg.mxu0
        %v1065 = vld [vmem:[#allocation2] sm:$0xff]
        %v1066 = vld [vmem:[#allocation2 + $0x8] sm:$0xff]
        %v1067 = vld [vmem:[#allocation2 + $0x10] sm:$0xff]
        %v1068 = vld [vmem:[#allocation2 + $0x18] sm:$0xff]
        %v1069 = vld [vmem:[#allocation2 + $0x20] sm:$0xff]
        %v1070 = vld [vmem:[#allocation2 + $0x28] sm:$0xff]
        %v1071 = vld [vmem:[#allocation2 + $0x30] sm:$0xff]
        %v1072 = vld [vmem:[#allocation2 + $0x38] sm:$0xff]
        %v1073 = vld [vmem:[#allocation2 + $0x40] sm:$0xff]
        %v1074 = vld [vmem:[#allocation2 + $0x48] sm:$0xff]
        %v1075 = vld [vmem:[#allocation2 + $0x50] sm:$0xff]
        %v1076 = vld [vmem:[#allocation2 + $0x58] sm:$0xff]
        %v1077 = vld [vmem:[#allocation2 + $0x60] sm:$0xff]
        %v1078 = vld [vmem:[#allocation2 + $0x68] sm:$0xff]
        %v1079 = vld [vmem:[#allocation2 + $0x70] sm:$0xff]
        %v1080 = vld [vmem:[#allocation2 + $0x78] sm:$0xff]
        %v1081 = vpack.c.bf16 %v1006, %v1003
        %v1082 = vpack.c.bf16 %v1014, %v1011
        %v1083 = vpack.c.bf16 %v1022, %v1019
        %v1084 = vpack.c.bf16 %v1030, %v1027
        %v1085 = vpack.c.bf16 %v1038, %v1035
        %v1086 = vpack.c.bf16 %v1046, %v1043
        %v1087 = vpack.c.bf16 %v1054, %v1051
        %v1088 = vpack.c.bf16 %v1062, %v1059
        %v1089 = vld [vmem:[%s428] sm:$0xf]
        %v1091 = vsel %vm603, %v1081, 0
        %v1094 = vsel %vm603, %v1082, 0
        %v1097 = vsel %vm603, %v1083, 0
        %v1100 = vsel %vm603, %v1084, 0
        %v1103 = vsel %vm603, %v1085, 0
        %v1106 = vsel %vm603, %v1086, 0
        %v1109 = vsel %vm603, %v1087, 0
        %v1112 = vsel %vm603, %v1088, 0
        %vm1114 = vcmask 1043456
        %v1116 = vsel %vm1114, %v1089, 0
        %1118 = vmatprep.subr.bf16.mxu0 0
        %1119 = vmatpush1.bf16.msra.mxu0 %v1116
        %1120 = vmatprep.subr.bf16.mxu0 0
        %1121 = vmatpush1.bf16.msra.mxu0 0
        %1122 = vmatprep.subr.bf16.mxu0 0
        %1123 = vmatpush1.bf16.msra.mxu0 0
        %1124 = vmatprep.subr.bf16.mxu0 0
        %1125 = vmatpush1.bf16.msra.mxu0 0
        %1126 = vmatprep.subr.bf16.mxu0 0
        %1127 = vmatpush1.bf16.msra.mxu0 0
        %1128 = vmatprep.subr.bf16.mxu0 0
        %1129 = vmatpush1.bf16.msra.mxu0 0
        %1130 = vmatprep.subr.bf16.mxu0 0
        %1131 = vmatpush1.bf16.msra.mxu0 0
        %1132 = vmatprep.subr.bf16.mxu0 0
        %1133 = vmatpush1.bf16.msra.mxu0 0
        %1134 = vmatprep.subr.bf16.mxu0 0
        %1135 = vmatpush1.bf16.msra.mxu0 0
        %1136 = vmatprep.subr.bf16.mxu0 0
        %1137 = vmatpush1.bf16.msra.mxu0 0
        %1138 = vmatprep.subr.bf16.mxu0 0
        %1139 = vmatpush1.bf16.msra.mxu0 0
        %1140 = vmatprep.subr.bf16.mxu0 0
        %1141 = vmatpush1.bf16.msra.mxu0 0
        %1142 = vmatprep.subr.bf16.mxu0 0
        %1143 = vmatpush1.bf16.msra.mxu0 0
        %1144 = vmatprep.subr.bf16.mxu0 0
        %1145 = vmatpush1.bf16.msra.mxu0 0
        %1146 = vmatprep.subr.bf16.mxu0 0
        %1147 = vmatpush1.bf16.msra.mxu0 0
        %1148 = vmatprep.subr.bf16.mxu0 0
        %1149 = vmatpush1.bf16.msra.mxu0 0
        %1150 = vmatprep.mubr.bf16.mxu0 0
        %1151 = vmatmul.mubr.bf16.gmra.mrb[0].mxu0 %v1091
        %v1152 = vpop.f32.mrb[0].mxu0
        %v1153 = vadd.f32 0.0, %v1152
        %v1154 = vpop.f32.mrb[0].mxu0
        %v1155 = vpop.f32.mrb[0].mxu0
        %v1156 = vadd.f32 0.0, %v1155
        %v1157 = vpop.f32.mrb[0].mxu0
        %1158 = vmatprep.mubr.bf16.mxu0 0
        %1159 = vmatmul.mubr.bf16.gmra.mrb[0].mxu0 %v1094
        %v1160 = vpop.f32.mrb[0].mxu0
        %v1161 = vadd.f32 0.0, %v1160
        %v1162 = vpop.f32.mrb[0].mxu0
        %v1163 = vpop.f32.mrb[0].mxu0
        %v1164 = vadd.f32 0.0, %v1163
        %v1165 = vpop.f32.mrb[0].mxu0
        %1166 = vmatprep.mubr.bf16.mxu0 0
        %1167 = vmatmul.mubr.bf16.gmra.mrb[0].mxu0 %v1097
        %v1168 = vpop.f32.mrb[0].mxu0
        %v1169 = vadd.f32 0.0, %v1168
        %v1170 = vpop.f32.mrb[0].mxu0
        %v1171 = vpop.f32.mrb[0].mxu0
        %v1172 = vadd.f32 0.0, %v1171
        %v1173 = vpop.f32.mrb[0].mxu0
        %1174 = vmatprep.mubr.bf16.mxu0 0
        %1175 = vmatmul.mubr.bf16.gmra.mrb[0].mxu0 %v1100
        %v1176 = vpop.f32.mrb[0].mxu0
        %v1177 = vadd.f32 0.0, %v1176
        %v1178 = vpop.f32.mrb[0].mxu0
        %v1179 = vpop.f32.mrb[0].mxu0
        %v1180 = vadd.f32 0.0, %v1179
        %v1181 = vpop.f32.mrb[0].mxu0
        %1182 = vmatprep.mubr.bf16.mxu0 0
        %1183 = vmatmul.mubr.bf16.gmra.mrb[0].mxu0 %v1103
        %v1184 = vpop.f32.mrb[0].mxu0
        %v1185 = vadd.f32 0.0, %v1184
        %v1186 = vpop.f32.mrb[0].mxu0
        %v1187 = vpop.f32.mrb[0].mxu0
        %v1188 = vadd.f32 0.0, %v1187
        %v1189 = vpop.f32.mrb[0].mxu0
        %1190 = vmatprep.mubr.bf16.mxu0 0
        %1191 = vmatmul.mubr.bf16.gmra.mrb[0].mxu0 %v1106
        %v1192 = vpop.f32.mrb[0].mxu0
        %v1193 = vadd.f32 0.0, %v1192
        %v1194 = vpop.f32.mrb[0].mxu0
        %v1195 = vpop.f32.mrb[0].mxu0
        %v1196 = vadd.f32 0.0, %v1195
        %v1197 = vpop.f32.mrb[0].mxu0
        %1198 = vmatprep.mubr.bf16.mxu0 0
        %1199 = vmatmul.mubr.bf16.gmra.mrb[0].mxu0 %v1109
        %v1200 = vpop.f32.mrb[0].mxu0
        %v1201 = vadd.f32 0.0, %v1200
        %v1202 = vpop.f32.mrb[0].mxu0
        %v1203 = vpop.f32.mrb[0].mxu0
        %v1204 = vadd.f32 0.0, %v1203
        %v1205 = vpop.f32.mrb[0].mxu0
        %1206 = vmatprep.mubr.bf16.mxu0 0
        %1207 = vmatmul.mubr.bf16.gmra.mrb[0].mxu0 %v1112
        %v1208 = vpop.f32.mrb[0].mxu0
        %v1209 = vadd.f32 0.0, %v1208
        %v1210 = vpop.f32.mrb[0].mxu0
        %v1211 = vpop.f32.mrb[0].mxu0
        %v1212 = vadd.f32 0.0, %v1211
        %v1213 = vpop.f32.mrb[0].mxu0
        %1214 = vdwg.mxu0
        %v1215 = vadd.f32 %v1065, %v1153
        %v1216 = vadd.f32 %v1066, %v1156
        %v1217 = vadd.f32 %v1067, %v1161
        %v1218 = vadd.f32 %v1068, %v1164
        %v1219 = vadd.f32 %v1069, %v1169
        %v1220 = vadd.f32 %v1070, %v1172
        %v1221 = vadd.f32 %v1071, %v1177
        %v1222 = vadd.f32 %v1072, %v1180
        %v1223 = vadd.f32 %v1073, %v1185
        %v1224 = vadd.f32 %v1074, %v1188
        %v1225 = vadd.f32 %v1075, %v1193
        %v1226 = vadd.f32 %v1076, %v1196
        %v1227 = vadd.f32 %v1077, %v1201
        %v1228 = vadd.f32 %v1078, %v1204
        %v1229 = vadd.f32 %v1079, %v1209
        %v1230 = vadd.f32 %v1080, %v1212
        %vm1231 = vcmask 261120
        %1232 = vst.msk [vmem:[#allocation2] sm:$0xff] %vm1231, %v1215
        %1233 = vst.msk [vmem:[#allocation2 + $0x8] sm:$0xff] %vm1231, %v1216
        %1234 = vst.msk [vmem:[#allocation2 + $0x10] sm:$0xff] %vm1231, %v1217
        %1235 = vst.msk [vmem:[#allocation2 + $0x18] sm:$0xff] %vm1231, %v1218
        %1236 = vst.msk [vmem:[#allocation2 + $0x20] sm:$0xff] %vm1231, %v1219
        %1237 = vst.msk [vmem:[#allocation2 + $0x28] sm:$0xff] %vm1231, %v1220
        %1238 = vst.msk [vmem:[#allocation2 + $0x30] sm:$0xff] %vm1231, %v1221
        %1239 = vst.msk [vmem:[#allocation2 + $0x38] sm:$0xff] %vm1231, %v1222
        %1240 = vst.msk [vmem:[#allocation2 + $0x40] sm:$0xff] %vm1231, %v1223
        %1241 = vst.msk [vmem:[#allocation2 + $0x48] sm:$0xff] %vm1231, %v1224
        %1242 = vst.msk [vmem:[#allocation2 + $0x50] sm:$0xff] %vm1231, %v1225
        %1243 = vst.msk [vmem:[#allocation2 + $0x58] sm:$0xff] %vm1231, %v1226
        %1244 = vst.msk [vmem:[#allocation2 + $0x60] sm:$0xff] %vm1231, %v1227
        %1245 = vst.msk [vmem:[#allocation2 + $0x68] sm:$0xff] %vm1231, %v1228
        %1246 = vst.msk [vmem:[#allocation2 + $0x70] sm:$0xff] %vm1231, %v1229
        %1247 = vst.msk [vmem:[#allocation2 + $0x78] sm:$0xff] %vm1231, %v1230
        %p1248 = scmp.eq.s32.totalorder %s19, 3
        // Predicated region
        $region78: #{qattention_forward.3} parent=68 // pred_check
          %p1249 = pneg %p1248
        $region79: #{qattention_forward.3} parent=68 // pred_check_branch
          %1251 = sbr.rel (%p1249) target = $region81
        $region80: #{qattention_forward.3} parent=68 // pred_region
          %v1252 = vld [vmem:[#allocation2] sm:$0xff]
          %v1253 = vld [vmem:[#allocation2 + $0x8] sm:$0xff]
          %v1254 = vld [vmem:[#allocation2 + $0x10] sm:$0xff]
          %v1255 = vld [vmem:[#allocation2 + $0x18] sm:$0xff]
          %v1256 = vld [vmem:[#allocation2 + $0x20] sm:$0xff]
          %v1257 = vld [vmem:[#allocation2 + $0x28] sm:$0xff]
          %v1258 = vld [vmem:[#allocation2 + $0x30] sm:$0xff]
          %v1259 = vld [vmem:[#allocation2 + $0x38] sm:$0xff]
          %v1260 = vld [vmem:[#allocation2 + $0x40] sm:$0xff]
          %v1261 = vld [vmem:[#allocation2 + $0x48] sm:$0xff]
          %v1262 = vld [vmem:[#allocation2 + $0x50] sm:$0xff]
          %v1263 = vld [vmem:[#allocation2 + $0x58] sm:$0xff]
          %v1264 = vld [vmem:[#allocation2 + $0x60] sm:$0xff]
          %v1265 = vld [vmem:[#allocation2 + $0x68] sm:$0xff]
          %v1266 = vld [vmem:[#allocation2 + $0x70] sm:$0xff]
          %v1267 = vld [vmem:[#allocation2 + $0x78] sm:$0xff]
          %v1268 = vld [vmem:[%s2] sm:$0x1]
          %v1270 = vlaneseq
          %v1271 = vshrl.u32 %v1270, 7
          %v1272 = vsub.s32 0, %v1271
          %v1273 = vrot.slane %v1268, %v1272
          %v1275 = vadd.f32 %v1252, %v1273
          %v1276 = vadd.f32 %v1253, %v1273
          %v1277 = vadd.f32 %v1254, %v1273
          %v1278 = vadd.f32 %v1255, %v1273
          %v1279 = vadd.f32 %v1256, %v1273
          %v1280 = vadd.f32 %v1257, %v1273
          %v1281 = vadd.f32 %v1258, %v1273
          %v1282 = vadd.f32 %v1259, %v1273
          %v1283 = vadd.f32 %v1260, %v1273
          %v1284 = vadd.f32 %v1261, %v1273
          %v1285 = vadd.f32 %v1262, %v1273
          %v1286 = vadd.f32 %v1263, %v1273
          %v1287 = vadd.f32 %v1264, %v1273
          %v1288 = vadd.f32 %v1265, %v1273
          %v1289 = vadd.f32 %v1266, %v1273
          %v1290 = vadd.f32 %v1267, %v1273
          %1291 = vst.msk [vmem:[%s433] sm:$0xff] %vm1231, %v1275
          %1292 = vst.msk [vmem:[%s433 + $0x8] sm:$0xff] %vm1231, %v1276
          %1293 = vst.msk [vmem:[%s433 + $0x10] sm:$0xff] %vm1231, %v1277
          %1294 = vst.msk [vmem:[%s433 + $0x18] sm:$0xff] %vm1231, %v1278
          %1295 = vst.msk [vmem:[%s433 + $0x20] sm:$0xff] %vm1231, %v1279
          %1296 = vst.msk [vmem:[%s433 + $0x28] sm:$0xff] %vm1231, %v1280
          %1297 = vst.msk [vmem:[%s433 + $0x30] sm:$0xff] %vm1231, %v1281
          %1298 = vst.msk [vmem:[%s433 + $0x38] sm:$0xff] %vm1231, %v1282
          %1299 = vst.msk [vmem:[%s433 + $0x40] sm:$0xff] %vm1231, %v1283
          %1300 = vst.msk [vmem:[%s433 + $0x48] sm:$0xff] %vm1231, %v1284
          %1301 = vst.msk [vmem:[%s433 + $0x50] sm:$0xff] %vm1231, %v1285
          %1302 = vst.msk [vmem:[%s433 + $0x58] sm:$0xff] %vm1231, %v1286
          %1303 = vst.msk [vmem:[%s433 + $0x60] sm:$0xff] %vm1231, %v1287
          %1304 = vst.msk [vmem:[%s433 + $0x68] sm:$0xff] %vm1231, %v1288
          %1305 = vst.msk [vmem:[%s433 + $0x70] sm:$0xff] %vm1231, %v1289
          %1306 = vst.msk [vmem:[%s433 + $0x78] sm:$0xff] %vm1231, %v1290
        $region81: #{qattention_forward.3} parent=68 // pred_fallthru
          _
        %p1307 = scmp.lt.s32.totalorder %s18, 1
        %s1308 = scalar_select %p1307, %s18, 1
        %s1309 = smul.addr %s1308, 16
        %s1310 = smul.addr %s1309, 8
        %s1311 = scalar_lea.vmem %s3, %s1310
        // Predicated region
        $region82: #{qattention_forward.3} parent=68 // pred_check
          %p1312 = pneg %p119
        $region83: #{qattention_forward.3} parent=68 // pred_check_branch
          %1314 = sbr.rel (%p1312) target = $region85
        $region84: #{qattention_forward.3} parent=68 // pred_region
          _
        $region85: #{qattention_forward.3} parent=68 // pred_fallthru
          _
      $region69: #{qattention_forward.3} parent=5 // pred_fallthru
        _
      %p1315 = scmp.le.s32.totalorder 2, %s9
      // Predicated region
      $region86: #{qattention_forward.3} parent=5 // pred_check
        %p1316 = pneg %p1315
      $region87: #{qattention_forward.3} parent=5 // pred_check_branch
        %1318 = sbr.rel (%p1316) target = $region89
      $region88: #{qattention_forward.3} parent=5 // pred_region
        %s1319 = ssub.s32 %s9, 2
        // Predicated region
        $region90: #{qattention_forward.3} parent=88 // pred_check
          %p1320 = pneg %p125
        $region91: #{qattention_forward.3} parent=88 // pred_check_branch
          %1322 = sbr.rel (%p1320) target = $region93
        $region92: #{qattention_forward.3} parent=88 // pred_region
          %p1323 = scmp.lt.s32.totalorder %s20, 1
          %s1324 = scalar_select %p1323, %s20, 1
          %s1325 = smul.addr %s1324, 16
          %s1326 = smul.addr %s1325, 8
          %s1327 = scalar_lea.vmem %s3, %s1326
        $region93: #{qattention_forward.3} parent=88 // pred_fallthru
          _
      $region89: #{qattention_forward.3} parent=5 // pred_fallthru
        _
    $region6: #{qattention_forward.3} parent=1 // loop_footer
      %s13 = sadd.s32 1, %s9
    $region7: #{qattention_forward.3} parent=1 // loop_footer_branch
      %8 = sbr.rel target = $region3
    $region8: #{qattention_forward.3} parent=1 // loop_exit
      _

</llo_original>
